<compile_context>
chip_gen: v5e
topology: v5e:2x2
jax: 0.10.0
libtpu: 0.0.40
codegen_flags: <defaults>
</compile_context>

<pallas_src>
import functools

import jax
import jax.numpy as jnp
from jax.experimental import pallas as pl
from jax.experimental.pallas import tpu as pltpu

D_IN = 2103
H1 = 256
H2 = 128
LANE = 128


def _round_up(n, m):
    return ((n + m - 1) // m) * m


def _mlp_kernel(x_ref, w1_ref, b1_ref, w2_ref, b2_ref, w3_ref, b3_ref, o_ref):
    # One batch tile per grid step; weights stay VMEM-resident across steps.
    x = x_ref[...].astype(jnp.bfloat16)

    h1 = jnp.dot(x, w1_ref[...], preferred_element_type=jnp.float32)
    h1 = jnp.maximum(h1 + b1_ref[...], 0.0)

    h2 = jnp.dot(h1.astype(jnp.bfloat16), w2_ref[...],
                 preferred_element_type=jnp.float32)
    h2 = jnp.maximum(h2 + b2_ref[...], 0.0)

    out = jnp.dot(h2.astype(jnp.bfloat16), w3_ref[...],
                  preferred_element_type=jnp.float32)
    o_ref[...] = out + b3_ref[...]


def prepare_params(params, num_classes):
    """Pad ragged dims + cast weights to bf16 ONCE (hoisted out of the hot path)."""
    w1, b1, w2, b2, w3, b3 = params
    c_pad = _round_up(num_classes, LANE)

    w1_p = w1.astype(jnp.bfloat16)                       # (2103, 256)
    w2_p = w2.astype(jnp.bfloat16)                       # (256, 128)
    w3_p = jnp.zeros((H2, c_pad), jnp.bfloat16).at[:, :num_classes].set(
        w3.astype(jnp.bfloat16))                         # (128, c_pad), inert zero cols
    b1_p = b1.reshape(1, H1).astype(jnp.float32)
    b2_p = b2.reshape(1, H2).astype(jnp.float32)
    b3_p = jnp.zeros((1, c_pad), jnp.float32).at[0, :num_classes].set(
        b3.astype(jnp.float32))
    return (w1_p, b1_p, w2_p, b2_p, w3_p, b3_p)


def _choose_tile_b(batch):
    """Large batch tile for HBM bandwidth, but keep >=2 grid steps for v7x."""
    if batch <= 8:
        # Single block equal to the full array (block dim == array dim is allowed),
        # zero padding, zero wasted rows -- latency path is weight-DMA bound anyway.
        return max(batch, 1)
    t = 1024 if batch >= 4096 else 512
    # Halve until there are at least 2 batch tiles so v7x's two TensorCores
    # both get work under dimension_semantics=("parallel",).
    while t > 64 and pl.cdiv(batch, t) < 2:
        t //= 2
    return t


@functools.partial(jax.jit, static_argnames=("num_classes",))
def mlp_forward(x, prepared, num_classes):
    """x: (B, 2103) float32 or bfloat16 -> (B, num_classes) float32."""
    w1, b1, w2, b2, w3, b3 = prepared
    B, d_in = x.shape
    assert d_in == D_IN, d_in
    c_pad = w3.shape[1]

    tile_b = _choose_tile_b(B)
    grid_b = pl.cdiv(B, tile_b)          # ragged last block handled by Pallas; no jnp.pad

    x_itemsize = jnp.dtype(x.dtype).itemsize
    weight_bytes = ((w1.size + w2.size + w3.size) * 2
                    + (b1.size + b2.size + b3.size) * 4)
    flops = 2 * grid_b * tile_b * (D_IN * H1 + H1 * H2 + H2 * c_pad)
    bytes_accessed = B * D_IN * x_itemsize + weight_bytes + B * c_pad * 4

    # Explicit VMEM budget: double-buffered x tile + out tile + resident
    # weights + headroom for f32 activations / compiler scratch.  v5e's default
    # scoped limit (16 MiB) would otherwise reject tile_b=512; cap below v7x's
    # 64 MiB physical VMEM.
    vmem_limit = min(
        2 * tile_b * D_IN * x_itemsize      # x tile, double-buffered
        + 2 * tile_b * c_pad * 4            # out tile, double-buffered
        + 2 * weight_bytes                  # resident weights (worst case 2 bufs)
        + (16 << 20),                       # activations + scratch headroom
        56 << 20,
    )

    def const(i):
        return (0, 0)

    out_p = pl.pallas_call(
        _mlp_kernel,
        out_shape=jax.ShapeDtypeStruct((B, c_pad), jnp.float32),
        grid=(grid_b,),
        in_specs=[
            pl.BlockSpec((tile_b, D_IN), lambda i: (i, 0)),   # x tile (full K, no K pad)
            # Constant index_maps -> fetched once, VMEM-resident across batch tiles.
            pl.BlockSpec((D_IN, H1), const),                  # w1
            pl.BlockSpec((1, H1), const),                     # b1
            pl.BlockSpec((H1, H2), const),                    # w2
            pl.BlockSpec((1, H2), const),                     # b2
            pl.BlockSpec((H2, c_pad), const),                 # w3
            pl.BlockSpec((1, c_pad), const),                  # b3
        ],
        out_specs=pl.BlockSpec((tile_b, c_pad), lambda i: (i, 0)),
        compiler_params=pltpu.CompilerParams(
            dimension_semantics=("parallel",),
            vmem_limit_bytes=int(vmem_limit)),
        cost_estimate=pl.CostEstimate(
            flops=int(flops), transcendentals=0,
            bytes_accessed=int(bytes_accessed)),
    )(x, w1, b1, w2, b2, w3, b3)

    return out_p[:, :num_classes]


def init_params(key, num_classes):
    """Deterministic init mirroring nn.Linear's default U(-1/sqrt(fan_in), +...)."""
    def linear(key, fan_in, fan_out):
        kw, kb = jax.random.split(key)
        bound = 1.0 / (fan_in ** 0.5)
        w = jax.random.uniform(kw, (fan_in, fan_out), jnp.float32, -bound, bound)
        b = jax.random.uniform(kb, (fan_out,), jnp.float32, -bound, bound)
        return w, b

    k1, k2, k3 = jax.random.split(key, 3)
    w1, b1 = linear(k1, D_IN, H1)
    w2, b2 = linear(k2, H1, H2)
    w3, b3 = linear(k3, H2, num_classes)
    return (w1, b1, w2, b2, w3, b3)


def _reference(x, params):
    w1, b1, w2, b2, w3, b3 = params
    hp = jax.lax.Precision.HIGHEST
    h = jnp.maximum(jnp.dot(x, w1, precision=hp) + b1, 0.0)
    h = jnp.maximum(jnp.dot(h, w2, precision=hp) + b2, 0.0)
    return jnp.dot(h, w3, precision=hp) + b3


if __name__ == "__main__":
    num_classes = 10
    batch = 2

    key = jax.random.PRNGKey(0)
    k_params, k_x = jax.random.split(key)
    params = init_params(k_params, num_classes)
    prepared = prepare_params(params, num_classes)   # padded + bf16, done once
    x = jax.random.normal(k_x, (batch, D_IN), jnp.float32)

    out = mlp_forward(x, prepared, num_classes)
    out = jax.block_until_ready(out)

    ref = _reference(x, params)
    assert out.shape == (batch, num_classes), out.shape
    # bf16 weights/activations with f32 accumulation over K=2103: ~1e-2-level
    # error vs. the full-f32 reference is the accuracy contract here.
    assert jnp.allclose(out, ref, atol=2e-2, rtol=2e-2), float(
        jnp.max(jnp.abs(out - ref))
    )
    print("KERNEL_OK")
</pallas_src>

<mosaic_0001>
module attributes {stable_mosaic.version = 11 : i64} {
  func.func @_mlp_kernel(%arg0: i32, %arg1: memref<2x2103xf32, #tpu.memory_space<vmem>>, %arg2: memref<2103x256xbf16, #tpu.memory_space<vmem>>, %arg3: memref<1x256xf32, #tpu.memory_space<vmem>>, %arg4: memref<256x128xbf16, #tpu.memory_space<vmem>>, %arg5: memref<1x128xf32, #tpu.memory_space<vmem>>, %arg6: memref<128x128xbf16, #tpu.memory_space<vmem>>, %arg7: memref<1x128xf32, #tpu.memory_space<vmem>>, %arg8: memref<2x128xf32, #tpu.memory_space<vmem>>) attributes {dimension_semantics = [#tpu.dimension_semantics<parallel>], iteration_bounds = array<i64: 1>, scalar_prefetch = 0 : i64, scratch_operands = 0 : i64, tpu.core_type = #tpu.core_type<tc>, window_params = [{transform_indices = @transform_0, window_bounds = array<i64: 2, 2103>}, {pipeline_mode = #tpu.pipeline_mode<synchronous>, transform_indices = @transform_1, window_bounds = array<i64: 2103, 256>}, {pipeline_mode = #tpu.pipeline_mode<synchronous>, transform_indices = @transform_2, window_bounds = array<i64: 1, 256>}, {pipeline_mode = #tpu.pipeline_mode<synchronous>, transform_indices = @transform_3, window_bounds = array<i64: 256, 128>}, {pipeline_mode = #tpu.pipeline_mode<synchronous>, transform_indices = @transform_4, window_bounds = array<i64: 1, 128>}, {pipeline_mode = #tpu.pipeline_mode<synchronous>, transform_indices = @transform_5, window_bounds = array<i64: 128, 128>}, {pipeline_mode = #tpu.pipeline_mode<synchronous>, transform_indices = @transform_6, window_bounds = array<i64: 1, 128>}, {transform_indices = @transform_7, window_bounds = array<i64: 2, 128>}]} {
    %c0 = arith.constant 0 : index
    %c0_0 = arith.constant 0 : index
    %0 = vector.load %arg1[%c0, %c0_0] : memref<2x2103xf32, #tpu.memory_space<vmem>>, vector<2x2103xf32>
    %1 = arith.truncf %0 : vector<2x2103xf32> to vector<2x2103xbf16>
    %c0_1 = arith.constant 0 : index
    %c0_2 = arith.constant 0 : index
    %2 = vector.load %arg2[%c0_1, %c0_2] : memref<2103x256xbf16, #tpu.memory_space<vmem>>, vector<2103x256xbf16>
    %cst = arith.constant dense<0.000000e+00> : vector<2x256xf32>
    %3 = tpu.matmul %1, %2, %cst {dimension_numbers = #tpu.dot_dimension_numbers<[1], [0], [0], [1], [0, 0, 1, 1], [], []>} : vector<2x2103xbf16>, vector<2103x256xbf16>, vector<2x256xf32> -> vector<2x256xf32>
    %c0_3 = arith.constant 0 : index
    %c0_4 = arith.constant 0 : index
    %4 = vector.load %arg3[%c0_3, %c0_4] : memref<1x256xf32, #tpu.memory_space<vmem>>, vector<1x256xf32>
    %5 = vector.broadcast %4 : vector<1x256xf32> to vector<2x256xf32>
    %6 = arith.addf %3, %5 : vector<2x256xf32>
    %cst_5 = arith.constant 0.000000e+00 : f32
    %7 = vector.broadcast %cst_5 : f32 to vector<2x256xf32>
    %8 = arith.maximumf %6, %7 : vector<2x256xf32>
    %9 = arith.truncf %8 : vector<2x256xf32> to vector<2x256xbf16>
    %c0_6 = arith.constant 0 : index
    %c0_7 = arith.constant 0 : index
    %10 = vector.load %arg4[%c0_6, %c0_7] : memref<256x128xbf16, #tpu.memory_space<vmem>>, vector<256x128xbf16>
    %cst_8 = arith.constant dense<0.000000e+00> : vector<2x128xf32>
    %11 = tpu.matmul %9, %10, %cst_8 {dimension_numbers = #tpu.dot_dimension_numbers<[1], [0], [0], [1], [0, 0, 1, 1], [], []>} : vector<2x256xbf16>, vector<256x128xbf16>, vector<2x128xf32> -> vector<2x128xf32>
    %c0_9 = arith.constant 0 : index
    %c0_10 = arith.constant 0 : index
    %12 = vector.load %arg5[%c0_9, %c0_10] : memref<1x128xf32, #tpu.memory_space<vmem>>, vector<1x128xf32>
    %13 = vector.broadcast %12 : vector<1x128xf32> to vector<2x128xf32>
    %14 = arith.addf %11, %13 : vector<2x128xf32>
    %cst_11 = arith.constant 0.000000e+00 : f32
    %15 = vector.broadcast %cst_11 : f32 to vector<2x128xf32>
    %16 = arith.maximumf %14, %15 : vector<2x128xf32>
    %17 = arith.truncf %16 : vector<2x128xf32> to vector<2x128xbf16>
    %c0_12 = arith.constant 0 : index
    %c0_13 = arith.constant 0 : index
    %18 = vector.load %arg6[%c0_12, %c0_13] : memref<128x128xbf16, #tpu.memory_space<vmem>>, vector<128x128xbf16>
    %cst_14 = arith.constant dense<0.000000e+00> : vector<2x128xf32>
    %19 = tpu.matmul %17, %18, %cst_14 {dimension_numbers = #tpu.dot_dimension_numbers<[1], [0], [0], [1], [0, 0, 1, 1], [], []>} : vector<2x128xbf16>, vector<128x128xbf16>, vector<2x128xf32> -> vector<2x128xf32>
    %c0_15 = arith.constant 0 : index
    %c0_16 = arith.constant 0 : index
    %20 = vector.load %arg7[%c0_15, %c0_16] : memref<1x128xf32, #tpu.memory_space<vmem>>, vector<1x128xf32>
    %21 = vector.broadcast %20 : vector<1x128xf32> to vector<2x128xf32>
    %22 = arith.addf %19, %21 : vector<2x128xf32>
    %c0_17 = arith.constant 0 : index
    %c0_18 = arith.constant 0 : index
    %23 = vector.load %arg8[%c0_17, %c0_18] : memref<2x128xf32, #tpu.memory_space<vmem>>, vector<2x128xf32>
    tpu.vector_store %arg8[%c0_17, %c0_18], %22 {strides = array<i32>} : memref<2x128xf32, #tpu.memory_space<vmem>>, vector<2x128xf32>,
    return
  }
  func.func @transform_0(%arg0: i32) -> (i32, i32) {
    %c0_i32 = arith.constant 0 : i32
    %c0_i32_0 = arith.constant 0 : i32
    return %arg0, %c0_i32 : i32, i32
  }
  func.func @transform_1(%arg0: i32) -> (i32, i32) {
    %c0_i32 = arith.constant 0 : i32
    %c0_i32_0 = arith.constant 0 : i32
    %c0_i32_1 = arith.constant 0 : i32
    return %c0_i32, %c0_i32_0 : i32, i32
  }
  func.func @transform_2(%arg0: i32) -> (i32, i32) {
    %c0_i32 = arith.constant 0 : i32
    %c0_i32_0 = arith.constant 0 : i32
    %c0_i32_1 = arith.constant 0 : i32
    return %c0_i32, %c0_i32_0 : i32, i32
  }
  func.func @transform_3(%arg0: i32) -> (i32, i32) {
    %c0_i32 = arith.constant 0 : i32
    %c0_i32_0 = arith.constant 0 : i32
    %c0_i32_1 = arith.constant 0 : i32
    return %c0_i32, %c0_i32_0 : i32, i32
  }
  func.func @transform_4(%arg0: i32) -> (i32, i32) {
    %c0_i32 = arith.constant 0 : i32
    %c0_i32_0 = arith.constant 0 : i32
    %c0_i32_1 = arith.constant 0 : i32
    return %c0_i32, %c0_i32_0 : i32, i32
  }
  func.func @transform_5(%arg0: i32) -> (i32, i32) {
    %c0_i32 = arith.constant 0 : i32
    %c0_i32_0 = arith.constant 0 : i32
    %c0_i32_1 = arith.constant 0 : i32
    return %c0_i32, %c0_i32_0 : i32, i32
  }
  func.func @transform_6(%arg0: i32) -> (i32, i32) {
    %c0_i32 = arith.constant 0 : i32
    %c0_i32_0 = arith.constant 0 : i32
    %c0_i32_1 = arith.constant 0 : i32
    return %c0_i32, %c0_i32_0 : i32, i32
  }
  func.func @transform_7(%arg0: i32) -> (i32, i32) {
    %c0_i32 = arith.constant 0 : i32
    %c0_i32_0 = arith.constant 0 : i32
    return %arg0, %c0_i32 : i32, i32
  }
}

</mosaic_0001>

<llo_original>
// kernel: mlp_forward.1
$region0: #{mlp_forward.1}
  #allocation0 [shape = 'u32[]', space=smem, size = 0x4, offset = 0x4, fixed_abs, tag = 'smem constant byte address 0x4 - core index']
  #allocation1 [shape = 'u32[72,128]{1,0:T(1,128)}', space=vmem, size = 0x9000, scoped, tag = 'internal scratch']
  %s0 = inlined_call_operand.hbm [shape: f32[2,2103], index: 0, kind: input, shape index: {}]
  %s1 = inlined_call_operand.hbm [shape: bf16[2103,256], index: 1, kind: input, shape index: {}]
  %s2 = inlined_call_operand.hbm [shape: f32[1,256], index: 2, kind: input, shape index: {}]
  %s3 = inlined_call_operand.hbm [shape: bf16[256,128], index: 3, kind: input, shape index: {}]
  %s4 = inlined_call_operand.hbm [shape: f32[1,128], index: 4, kind: input, shape index: {}]
  %s5 = inlined_call_operand.hbm [shape: bf16[128,128], index: 5, kind: input, shape index: {}]
  %s6 = inlined_call_operand.hbm [shape: f32[1,128], index: 6, kind: input, shape index: {}]
  %s7 = inlined_call_operand.hbm [shape: f32[2,128], index: 7, kind: output, shape index: {}]
  %s8 = sld [smem:[#allocation0]]
  $region66: #{mlp_forward.1} parent=0
    _
  %s10 = ssub.s32 1, %s8
  %s11 = scalar_select 0, %s10, %s8
  $region1: #{mlp_forward.1} parent=0
    #allocation2 [shape = 'u8[17408]{0}', space=vmem, size = 0x4400, scoped, tag = 'input window, operand 0, single buffered']
    #allocation3 [shape = 's32[1]{0}', space=sflag, size = 0x4, scoped, tag = 'scoped memory for mlp_forward.1']
    #allocation4 [shape = 's32[1]{0}', space=sflag, size = 0x4, scoped, tag = 'scoped memory for mlp_forward.1']
    #allocation5 [shape = 'u8[1077248]{0}', space=vmem, size = 0x107000, scoped, tag = 'input window, operand 1, single buffered']
    #allocation6 [shape = 's32[1]{0}', space=sflag, size = 0x4, scoped, tag = 'scoped memory for mlp_forward.1']
    #allocation7 [shape = 'u8[1024]{0}', space=vmem, size = 0x400, scoped, tag = 'input window, operand 2, single buffered']
    #allocation8 [shape = 'u8[65536]{0}', space=vmem, size = 0x10000, scoped, tag = 'input window, operand 3, single buffered']
    #allocation9 [shape = 's32[1]{0}', space=sflag, size = 0x4, scoped, tag = 'scoped memory for mlp_forward.1']
    #allocation10 [shape = 'u8[512]{0}', space=vmem, size = 0x400, scoped, tag = 'input window, operand 4, single buffered']
    #allocation11 [shape = 'u8[32768]{0}', space=vmem, size = 0x8000, scoped, tag = 'input window, operand 5, single buffered']
    #allocation12 [shape = 's32[1]{0}', space=sflag, size = 0x4, scoped, tag = 'scoped memory for mlp_forward.1']
    #allocation13 [shape = 'u8[512]{0}', space=vmem, size = 0x400, scoped, tag = 'input window, operand 6, single buffered']
    #allocation14 [shape = 'u8[1024]{0}', space=vmem, size = 0x400, scoped, tag = 'output window, operand 0, single buffered']
    %12 = vsyncpa [#allocation3], 0
    %13 = vsyncpa [#allocation6], 0
    %14 = vsyncpa [#allocation9], 0
    %15 = vsyncpa [#allocation12], 0
    %16 = vsyncpa [#allocation4], 0
    // Predicated region
    $region2: #{mlp_forward.1} parent=1 // pred_check
      _
    $region3: #{mlp_forward.1} parent=1 // pred_check_branch
      %18 = sbr.rel (0) target = $region5
    $region4: #{mlp_forward.1} parent=1 // pred_region
      %20 = vsyncadd [#allocation3], 0
      %s22 = sshll.u32 %s0, 4
      %s23 = int_to_ptr.hbm [resolvable:$true] %s22
      %s24 = sshll.u32 [#allocation2], 4
      %s25 = int_to_ptr.vmem [resolvable:$true] %s24
      %27 = dma.hbm_to_vmem [thread:$0]  %s23, 544, %s25, [#allocation3]
    $region5: #{mlp_forward.1} parent=1 // pred_fallthru
      _
    // Predicated region
    $region6: #{mlp_forward.1} parent=1 // pred_check
      _
    $region7: #{mlp_forward.1} parent=1 // pred_check_branch
      %29 = sbr.rel (0) target = $region9
    $region8: #{mlp_forward.1} parent=1 // pred_region
      %31 = vsyncadd [#allocation6], 0
      %s32 = sshll.u32 %s1, 4
      %s33 = int_to_ptr.hbm [resolvable:$true] %s32
      %s34 = sshll.u32 [#allocation5], 4
      %s35 = int_to_ptr.vmem [resolvable:$true] %s34
      %40 = dma.hbm_to_vmem [thread:$0]  %s33, 33664, %s35, [#allocation6], 128, 128, 8
    $region9: #{mlp_forward.1} parent=1 // pred_fallthru
      _
    // Predicated region
    $region10: #{mlp_forward.1} parent=1 // pred_check
      _
    $region11: #{mlp_forward.1} parent=1 // pred_check_branch
      %42 = sbr.rel (0) target = $region13
    $region12: #{mlp_forward.1} parent=1 // pred_region
      %44 = vsyncadd [#allocation6], 0
      %s46 = sshll.u32 %s2, 4
      %s47 = int_to_ptr.hbm [resolvable:$true] %s46
      %s48 = sshll.u32 [#allocation7], 4
      %s49 = int_to_ptr.vmem [resolvable:$true] %s48
      %51 = dma.hbm_to_vmem [thread:$0]  %s47, 32, %s49, [#allocation6]
    $region13: #{mlp_forward.1} parent=1 // pred_fallthru
      _
    // Predicated region
    $region14: #{mlp_forward.1} parent=1 // pred_check
      _
    $region15: #{mlp_forward.1} parent=1 // pred_check_branch
      %53 = sbr.rel (0) target = $region17
    $region16: #{mlp_forward.1} parent=1 // pred_region
      %55 = vsyncadd [#allocation9], 0
      %s56 = sshll.u32 %s3, 4
      %s57 = int_to_ptr.hbm [resolvable:$true] %s56
      %s58 = sshll.u32 [#allocation8], 4
      %s59 = int_to_ptr.vmem [resolvable:$true] %s58
      %64 = dma.hbm_to_vmem [thread:$0]  %s57, 2048, %s59, [#allocation9], 64, 64, 4
    $region17: #{mlp_forward.1} parent=1 // pred_fallthru
      _
    // Predicated region
    $region18: #{mlp_forward.1} parent=1 // pred_check
      _
    $region19: #{mlp_forward.1} parent=1 // pred_check_branch
      %66 = sbr.rel (0) target = $region21
    $region20: #{mlp_forward.1} parent=1 // pred_region
      %68 = vsyncadd [#allocation9], 0
      %s70 = sshll.u32 %s4, 4
      %s71 = int_to_ptr.hbm [resolvable:$true] %s70
      %s72 = sshll.u32 [#allocation10], 4
      %s73 = int_to_ptr.vmem [resolvable:$true] %s72
      %75 = dma.hbm_to_vmem [thread:$0]  %s71, 16, %s73, [#allocation9]
    $region21: #{mlp_forward.1} parent=1 // pred_fallthru
      _
    // Predicated region
    $region22: #{mlp_forward.1} parent=1 // pred_check
      _
    $region23: #{mlp_forward.1} parent=1 // pred_check_branch
      %77 = sbr.rel (0) target = $region25
    $region24: #{mlp_forward.1} parent=1 // pred_region
      %79 = vsyncadd [#allocation12], 0
      %s80 = sshll.u32 %s5, 4
      %s81 = int_to_ptr.hbm [resolvable:$true] %s80
      %s82 = sshll.u32 [#allocation11], 4
      %s83 = int_to_ptr.vmem [resolvable:$true] %s82
      %88 = dma.hbm_to_vmem [thread:$0]  %s81, 1024, %s83, [#allocation12], 64, 64, 4
    $region25: #{mlp_forward.1} parent=1 // pred_fallthru
      _
    // Predicated region
    $region26: #{mlp_forward.1} parent=1 // pred_check
      _
    $region27: #{mlp_forward.1} parent=1 // pred_check_branch
      %90 = sbr.rel (0) target = $region29
    $region28: #{mlp_forward.1} parent=1 // pred_region
      %92 = vsyncadd [#allocation12], 0
      %s94 = sshll.u32 %s6, 4
      %s95 = int_to_ptr.hbm [resolvable:$true] %s94
      %s96 = sshll.u32 [#allocation13], 4
      %s97 = int_to_ptr.vmem [resolvable:$true] %s96
      %99 = dma.hbm_to_vmem [thread:$0]  %s95, 16, %s97, [#allocation12]
    $region29: #{mlp_forward.1} parent=1 // pred_fallthru
      _
    // Predicated region
    $region30: #{mlp_forward.1} parent=1 // pred_check
      _
    $region31: #{mlp_forward.1} parent=1 // pred_check_branch
      %101 = sbr.rel (0) target = $region33
    $region32: #{mlp_forward.1} parent=1 // pred_region
      %103 = dma.done [#allocation3], 544
    $region33: #{mlp_forward.1} parent=1 // pred_fallthru
      _
    // Predicated region
    $region34: #{mlp_forward.1} parent=1 // pred_check
      _
    $region35: #{mlp_forward.1} parent=1 // pred_check_branch
      %105 = sbr.rel (0) target = $region37
    $region36: #{mlp_forward.1} parent=1 // pred_region
      %107 = dma.done [#allocation6], 33664
    $region37: #{mlp_forward.1} parent=1 // pred_fallthru
      _
    // Predicated region
    $region38: #{mlp_forward.1} parent=1 // pred_check
      _
    $region39: #{mlp_forward.1} parent=1 // pred_check_branch
      %109 = sbr.rel (0) target = $region41
    $region40: #{mlp_forward.1} parent=1 // pred_region
      %111 = dma.done [#allocation6], 32
    $region41: #{mlp_forward.1} parent=1 // pred_fallthru
      _
    // Predicated region
    $region42: #{mlp_forward.1} parent=1 // pred_check
      _
    $region43: #{mlp_forward.1} parent=1 // pred_check_branch
      %113 = sbr.rel (0) target = $region45
    $region44: #{mlp_forward.1} parent=1 // pred_region
      %115 = dma.done [#allocation9], 2048
    $region45: #{mlp_forward.1} parent=1 // pred_fallthru
      _
    // Predicated region
    $region46: #{mlp_forward.1} parent=1 // pred_check
      _
    $region47: #{mlp_forward.1} parent=1 // pred_check_branch
      %117 = sbr.rel (0) target = $region49
    $region48: #{mlp_forward.1} parent=1 // pred_region
      %119 = dma.done [#allocation9], 16
    $region49: #{mlp_forward.1} parent=1 // pred_fallthru
      _
    // Predicated region
    $region50: #{mlp_forward.1} parent=1 // pred_check
      _
    $region51: #{mlp_forward.1} parent=1 // pred_check_branch
      %121 = sbr.rel (0) target = $region53
    $region52: #{mlp_forward.1} parent=1 // pred_region
      %123 = dma.done [#allocation12], 1024
    $region53: #{mlp_forward.1} parent=1 // pred_fallthru
      _
    // Predicated region
    $region54: #{mlp_forward.1} parent=1 // pred_check
      _
    $region55: #{mlp_forward.1} parent=1 // pred_check_branch
      %125 = sbr.rel (0) target = $region57
    $region56: #{mlp_forward.1} parent=1 // pred_region
      %127 = dma.done [#allocation12], 16
    $region57: #{mlp_forward.1} parent=1 // pred_fallthru
      _
    %v129 = vld [vmem:[#allocation2] sm:$0xff]
    %v130 = vld [vmem:[#allocation2 + $0x8] sm:$0xff]
    %v131 = vld [vmem:[#allocation2 + $0x10] sm:$0xff]
    %v132 = vld [vmem:[#allocation2 + $0x18] sm:$0xff]
    %v133 = vld [vmem:[#allocation2 + $0x20] sm:$0x3]
    %139 = vst [vmem:[#allocation1] ss:$4 sm:$0xff] %v129
    %s140 = scalar_lea.vmem [#allocation1], 32
    %141 = vst [vmem:[%s140] ss:$4 sm:$0xff] %v130
    %v142 = vld.sshfl [vmem:[#allocation1] sm:$0xff pattern:$0x73625140]
    %v143 = vld.sshfl [vmem:[#allocation1 + $0x8] sm:$0xff pattern:$0x73625140]
    %v144 = vld.sshfl [vmem:[#allocation1 + $0x10] sm:$0xff pattern:$0x73625140]
    %v145 = vld.sshfl [vmem:[#allocation1 + $0x18] sm:$0xff pattern:$0x73625140]
    %v146 = vld.sshfl [vmem:[#allocation1 + $0x20] sm:$0xff pattern:$0x73625140]
    %v147 = vld.sshfl [vmem:[#allocation1 + $0x28] sm:$0xff pattern:$0x73625140]
    %v148 = vld.sshfl [vmem:[#allocation1 + $0x30] sm:$0xff pattern:$0x73625140]
    %v149 = vld.sshfl [vmem:[#allocation1 + $0x38] sm:$0xff pattern:$0x73625140]
    %150 = vst [vmem:[#allocation1] ss:$4 sm:$0xff] %v131
    %151 = vst [vmem:[%s140] ss:$4 sm:$0xff] %v132
    %v152 = vld.sshfl [vmem:[#allocation1] sm:$0xff pattern:$0x73625140]
    %v153 = vld.sshfl [vmem:[#allocation1 + $0x8] sm:$0xff pattern:$0x73625140]
    %v154 = vld.sshfl [vmem:[#allocation1 + $0x10] sm:$0xff pattern:$0x73625140]
    %v155 = vld.sshfl [vmem:[#allocation1 + $0x18] sm:$0xff pattern:$0x73625140]
    %v156 = vld.sshfl [vmem:[#allocation1 + $0x20] sm:$0xff pattern:$0x73625140]
    %v157 = vld.sshfl [vmem:[#allocation1 + $0x28] sm:$0xff pattern:$0x73625140]
    %v158 = vld.sshfl [vmem:[#allocation1 + $0x30] sm:$0xff pattern:$0x73625140]
    %v159 = vld.sshfl [vmem:[#allocation1 + $0x38] sm:$0xff pattern:$0x73625140]
    %160 = vst [vmem:[#allocation1] ss:$4 sm:$0xff] %v133
    %v161 = vld.sshfl [vmem:[#allocation1] sm:$0xff pattern:$0x73625140]
    %v179 = vpack.c.bf16 %v142, %v142
    %v180 = vpack.c.bf16 %v143, %v143
    %v181 = vpack.c.bf16 %v144, %v144
    %v182 = vpack.c.bf16 %v145, %v145
    %v183 = vpack.c.bf16 %v146, %v146
    %v184 = vpack.c.bf16 %v147, %v147
    %v185 = vpack.c.bf16 %v148, %v148
    %v186 = vpack.c.bf16 %v149, %v149
    %v187 = vpack.c.bf16 %v152, %v152
    %v188 = vpack.c.bf16 %v153, %v153
    %v189 = vpack.c.bf16 %v154, %v154
    %v190 = vpack.c.bf16 %v155, %v155
    %v191 = vpack.c.bf16 %v156, %v156
    %v192 = vpack.c.bf16 %v157, %v157
    %v193 = vpack.c.bf16 %v158, %v158
    %v194 = vpack.c.bf16 %v159, %v159
    %v195 = vpack.c.bf16 %v161, %v161
    %v196 = vld [vmem:[#allocation5] sm:$0xff]
    %v197 = vld [vmem:[#allocation5 + $0x8] sm:$0xff]
    %v198 = vld [vmem:[#allocation5 + $0x10] sm:$0xff]
    %v199 = vld [vmem:[#allocation5 + $0x18] sm:$0xff]
    %v200 = vld [vmem:[#allocation5 + $0x20] sm:$0xff]
    %v201 = vld [vmem:[#allocation5 + $0x28] sm:$0xff]
    %v202 = vld [vmem:[#allocation5 + $0x30] sm:$0xff]
    %v203 = vld [vmem:[#allocation5 + $0x38] sm:$0xff]
    %v204 = vld [vmem:[#allocation5 + $0x40] sm:$0xff]
    %v205 = vld [vmem:[#allocation5 + $0x48] sm:$0xff]
    %v206 = vld [vmem:[#allocation5 + $0x50] sm:$0xff]
    %v207 = vld [vmem:[#allocation5 + $0x58] sm:$0xff]
    %v208 = vld [vmem:[#allocation5 + $0x60] sm:$0xff]
    %v209 = vld [vmem:[#allocation5 + $0x68] sm:$0xff]
    %v210 = vld [vmem:[#allocation5 + $0x70] sm:$0xff]
    %v211 = vld [vmem:[#allocation5 + $0x78] sm:$0xff]
    %v212 = vld [vmem:[#allocation5 + $0x80] sm:$0xff]
    %v213 = vld [vmem:[#allocation5 + $0x88] sm:$0xff]
    %v214 = vld [vmem:[#allocation5 + $0x90] sm:$0xff]
    %v215 = vld [vmem:[#allocation5 + $0x98] sm:$0xff]
    %v216 = vld [vmem:[#allocation5 + $0xa0] sm:$0xff]
    %v217 = vld [vmem:[#allocation5 + $0xa8] sm:$0xff]
    %v218 = vld [vmem:[#allocation5 + $0xb0] sm:$0xff]
    %v219 = vld [vmem:[#allocation5 + $0xb8] sm:$0xff]
    %v220 = vld [vmem:[#allocation5 + $0xc0] sm:$0xff]
    %v221 = vld [vmem:[#allocation5 + $0xc8] sm:$0xff]
    %v222 = vld [vmem:[#allocation5 + $0xd0] sm:$0xff]
    %v223 = vld [vmem:[#allocation5 + $0xd8] sm:$0xff]
    %v224 = vld [vmem:[#allocation5 + $0xe0] sm:$0xff]
    %v225 = vld [vmem:[#allocation5 + $0xe8] sm:$0xff]
    %v226 = vld [vmem:[#allocation5 + $0xf0] sm:$0xff]
    %v227 = vld [vmem:[#allocation5 + $0xf8] sm:$0xff]
    %v228 = vld [vmem:[#allocation5 + $0x100] sm:$0xff]
    %v229 = vld [vmem:[#allocation5 + $0x108] sm:$0xff]
    %v230 = vld [vmem:[#allocation5 + $0x110] sm:$0xff]
    %v231 = vld [vmem:[#allocation5 + $0x118] sm:$0xff]
    %v232 = vld [vmem:[#allocation5 + $0x120] sm:$0xff]
    %v233 = vld [vmem:[#allocation5 + $0x128] sm:$0xff]
    %v234 = vld [vmem:[#allocation5 + $0x130] sm:$0xff]
    %v235 = vld [vmem:[#allocation5 + $0x138] sm:$0xff]
    %v236 = vld [vmem:[#allocation5 + $0x140] sm:$0xff]
    %v237 = vld [vmem:[#allocation5 + $0x148] sm:$0xff]
    %v238 = vld [vmem:[#allocation5 + $0x150] sm:$0xff]
    %v239 = vld [vmem:[#allocation5 + $0x158] sm:$0xff]
    %v240 = vld [vmem:[#allocation5 + $0x160] sm:$0xff]
    %v241 = vld [vmem:[#allocation5 + $0x168] sm:$0xff]
    %v242 = vld [vmem:[#allocation5 + $0x170] sm:$0xff]
    %v243 = vld [vmem:[#allocation5 + $0x178] sm:$0xff]
    %v244 = vld [vmem:[#allocation5 + $0x180] sm:$0xff]
    %v245 = vld [vmem:[#allocation5 + $0x188] sm:$0xff]
    %v246 = vld [vmem:[#allocation5 + $0x190] sm:$0xff]
    %v247 = vld [vmem:[#allocation5 + $0x198] sm:$0xff]
    %v248 = vld [vmem:[#allocation5 + $0x1a0] sm:$0xff]
    %v249 = vld [vmem:[#allocation5 + $0x1a8] sm:$0xff]
    %v250 = vld [vmem:[#allocation5 + $0x1b0] sm:$0xff]
    %v251 = vld [vmem:[#allocation5 + $0x1b8] sm:$0xff]
    %v252 = vld [vmem:[#allocation5 + $0x1c0] sm:$0xff]
    %v253 = vld [vmem:[#allocation5 + $0x1c8] sm:$0xff]
    %v254 = vld [vmem:[#allocation5 + $0x1d0] sm:$0xff]
    %v255 = vld [vmem:[#allocation5 + $0x1d8] sm:$0xff]
    %v256 = vld [vmem:[#allocation5 + $0x1e0] sm:$0xff]
    %v257 = vld [vmem:[#allocation5 + $0x1e8] sm:$0xff]
    %v258 = vld [vmem:[#allocation5 + $0x1f0] sm:$0xff]
    %v259 = vld [vmem:[#allocation5 + $0x1f8] sm:$0xff]
    %v260 = vld [vmem:[#allocation5 + $0x200] sm:$0xff]
    %v261 = vld [vmem:[#allocation5 + $0x208] sm:$0xff]
    %v262 = vld [vmem:[#allocation5 + $0x210] sm:$0xff]
    %v263 = vld [vmem:[#allocation5 + $0x218] sm:$0xff]
    %v264 = vld [vmem:[#allocation5 + $0x220] sm:$0xff]
    %v265 = vld [vmem:[#allocation5 + $0x228] sm:$0xff]
    %v266 = vld [vmem:[#allocation5 + $0x230] sm:$0xff]
    %v267 = vld [vmem:[#allocation5 + $0x238] sm:$0xff]
    %v268 = vld [vmem:[#allocation5 + $0x240] sm:$0xff]
    %v269 = vld [vmem:[#allocation5 + $0x248] sm:$0xff]
    %v270 = vld [vmem:[#allocation5 + $0x250] sm:$0xff]
    %v271 = vld [vmem:[#allocation5 + $0x258] sm:$0xff]
    %v272 = vld [vmem:[#allocation5 + $0x260] sm:$0xff]
    %v273 = vld [vmem:[#allocation5 + $0x268] sm:$0xff]
    %v274 = vld [vmem:[#allocation5 + $0x270] sm:$0xff]
    %v275 = vld [vmem:[#allocation5 + $0x278] sm:$0xff]
    %v276 = vld [vmem:[#allocation5 + $0x280] sm:$0xff]
    %v277 = vld [vmem:[#allocation5 + $0x288] sm:$0xff]
    %v278 = vld [vmem:[#allocation5 + $0x290] sm:$0xff]
    %v279 = vld [vmem:[#allocation5 + $0x298] sm:$0xff]
    %v280 = vld [vmem:[#allocation5 + $0x2a0] sm:$0xff]
    %v281 = vld [vmem:[#allocation5 + $0x2a8] sm:$0xff]
    %v282 = vld [vmem:[#allocation5 + $0x2b0] sm:$0xff]
    %v283 = vld [vmem:[#allocation5 + $0x2b8] sm:$0xff]
    %v284 = vld [vmem:[#allocation5 + $0x2c0] sm:$0xff]
    %v285 = vld [vmem:[#allocation5 + $0x2c8] sm:$0xff]
    %v286 = vld [vmem:[#allocation5 + $0x2d0] sm:$0xff]
    %v287 = vld [vmem:[#allocation5 + $0x2d8] sm:$0xff]
    %v288 = vld [vmem:[#allocation5 + $0x2e0] sm:$0xff]
    %v289 = vld [vmem:[#allocation5 + $0x2e8] sm:$0xff]
    %v290 = vld [vmem:[#allocation5 + $0x2f0] sm:$0xff]
    %v291 = vld [vmem:[#allocation5 + $0x2f8] sm:$0xff]
    %v292 = vld [vmem:[#allocation5 + $0x300] sm:$0xff]
    %v293 = vld [vmem:[#allocation5 + $0x308] sm:$0xff]
    %v294 = vld [vmem:[#allocation5 + $0x310] sm:$0xff]
    %v295 = vld [vmem:[#allocation5 + $0x318] sm:$0xff]
    %v296 = vld [vmem:[#allocation5 + $0x320] sm:$0xff]
    %v297 = vld [vmem:[#allocation5 + $0x328] sm:$0xff]
    %v298 = vld [vmem:[#allocation5 + $0x330] sm:$0xff]
    %v299 = vld [vmem:[#allocation5 + $0x338] sm:$0xff]
    %v300 = vld [vmem:[#allocation5 + $0x340] sm:$0xff]
    %v301 = vld [vmem:[#allocation5 + $0x348] sm:$0xff]
    %v302 = vld [vmem:[#allocation5 + $0x350] sm:$0xff]
    %v303 = vld [vmem:[#allocation5 + $0x358] sm:$0xff]
    %v304 = vld [vmem:[#allocation5 + $0x360] sm:$0xff]
    %v305 = vld [vmem:[#allocation5 + $0x368] sm:$0xff]
    %v306 = vld [vmem:[#allocation5 + $0x370] sm:$0xff]
    %v307 = vld [vmem:[#allocation5 + $0x378] sm:$0xff]
    %v308 = vld [vmem:[#allocation5 + $0x380] sm:$0xff]
    %v309 = vld [vmem:[#allocation5 + $0x388] sm:$0xff]
    %v310 = vld [vmem:[#allocation5 + $0x390] sm:$0xff]
    %v311 = vld [vmem:[#allocation5 + $0x398] sm:$0xff]
    %v312 = vld [vmem:[#allocation5 + $0x3a0] sm:$0xff]
    %v313 = vld [vmem:[#allocation5 + $0x3a8] sm:$0xff]
    %v314 = vld [vmem:[#allocation5 + $0x3b0] sm:$0xff]
    %v315 = vld [vmem:[#allocation5 + $0x3b8] sm:$0xff]
    %v316 = vld [vmem:[#allocation5 + $0x3c0] sm:$0xff]
    %v317 = vld [vmem:[#allocation5 + $0x3c8] sm:$0xff]
    %v318 = vld [vmem:[#allocation5 + $0x3d0] sm:$0xff]
    %v319 = vld [vmem:[#allocation5 + $0x3d8] sm:$0xff]
    %v320 = vld [vmem:[#allocation5 + $0x3e0] sm:$0xff]
    %v321 = vld [vmem:[#allocation5 + $0x3e8] sm:$0xff]
    %v322 = vld [vmem:[#allocation5 + $0x3f0] sm:$0xff]
    %v323 = vld [vmem:[#allocation5 + $0x3f8] sm:$0xff]
    %v324 = vld [vmem:[#allocation5 + $0x400] sm:$0xff]
    %v325 = vld [vmem:[#allocation5 + $0x408] sm:$0xff]
    %v326 = vld [vmem:[#allocation5 + $0x410] sm:$0xff]
    %v327 = vld [vmem:[#allocation5 + $0x418] sm:$0xff]
    %v328 = vld [vmem:[#allocation5 + $0x420] sm:$0xff]
    %v329 = vld [vmem:[#allocation5 + $0x428] sm:$0xff]
    %v330 = vld [vmem:[#allocation5 + $0x430] sm:$0xff]
    %v331 = vld [vmem:[#allocation5 + $0x438] sm:$0xff]
    %v332 = vld [vmem:[#allocation5 + $0x440] sm:$0xff]
    %v333 = vld [vmem:[#allocation5 + $0x448] sm:$0xff]
    %v334 = vld [vmem:[#allocation5 + $0x450] sm:$0xff]
    %v335 = vld [vmem:[#allocation5 + $0x458] sm:$0xff]
    %v336 = vld [vmem:[#allocation5 + $0x460] sm:$0xff]
    %v337 = vld [vmem:[#allocation5 + $0x468] sm:$0xff]
    %v338 = vld [vmem:[#allocation5 + $0x470] sm:$0xff]
    %v339 = vld [vmem:[#allocation5 + $0x478] sm:$0xff]
    %v340 = vld [vmem:[#allocation5 + $0x480] sm:$0xff]
    %v341 = vld [vmem:[#allocation5 + $0x488] sm:$0xff]
    %v342 = vld [vmem:[#allocation5 + $0x490] sm:$0xff]
    %v343 = vld [vmem:[#allocation5 + $0x498] sm:$0xff]
    %v344 = vld [vmem:[#allocation5 + $0x4a0] sm:$0xff]
    %v345 = vld [vmem:[#allocation5 + $0x4a8] sm:$0xff]
    %v346 = vld [vmem:[#allocation5 + $0x4b0] sm:$0xff]
    %v347 = vld [vmem:[#allocation5 + $0x4b8] sm:$0xff]
    %v348 = vld [vmem:[#allocation5 + $0x4c0] sm:$0xff]
    %v349 = vld [vmem:[#allocation5 + $0x4c8] sm:$0xff]
    %v350 = vld [vmem:[#allocation5 + $0x4d0] sm:$0xff]
    %v351 = vld [vmem:[#allocation5 + $0x4d8] sm:$0xff]
    %v352 = vld [vmem:[#allocation5 + $0x4e0] sm:$0xff]
    %v353 = vld [vmem:[#allocation5 + $0x4e8] sm:$0xff]
    %v354 = vld [vmem:[#allocation5 + $0x4f0] sm:$0xff]
    %v355 = vld [vmem:[#allocation5 + $0x4f8] sm:$0xff]
    %v356 = vld [vmem:[#allocation5 + $0x500] sm:$0xff]
    %v357 = vld [vmem:[#allocation5 + $0x508] sm:$0xff]
    %v358 = vld [vmem:[#allocation5 + $0x510] sm:$0xff]
    %v359 = vld [vmem:[#allocation5 + $0x518] sm:$0xff]
    %v360 = vld [vmem:[#allocation5 + $0x520] sm:$0xff]
    %v361 = vld [vmem:[#allocation5 + $0x528] sm:$0xff]
    %v362 = vld [vmem:[#allocation5 + $0x530] sm:$0xff]
    %v363 = vld [vmem:[#allocation5 + $0x538] sm:$0xff]
    %v364 = vld [vmem:[#allocation5 + $0x540] sm:$0xff]
    %v365 = vld [vmem:[#allocation5 + $0x548] sm:$0xff]
    %v366 = vld [vmem:[#allocation5 + $0x550] sm:$0xff]
    %v367 = vld [vmem:[#allocation5 + $0x558] sm:$0xff]
    %v368 = vld [vmem:[#allocation5 + $0x560] sm:$0xff]
    %v369 = vld [vmem:[#allocation5 + $0x568] sm:$0xff]
    %v370 = vld [vmem:[#allocation5 + $0x570] sm:$0xff]
    %v371 = vld [vmem:[#allocation5 + $0x578] sm:$0xff]
    %v372 = vld [vmem:[#allocation5 + $0x580] sm:$0xff]
    %v373 = vld [vmem:[#allocation5 + $0x588] sm:$0xff]
    %v374 = vld [vmem:[#allocation5 + $0x590] sm:$0xff]
    %v375 = vld [vmem:[#allocation5 + $0x598] sm:$0xff]
    %v376 = vld [vmem:[#allocation5 + $0x5a0] sm:$0xff]
    %v377 = vld [vmem:[#allocation5 + $0x5a8] sm:$0xff]
    %v378 = vld [vmem:[#allocation5 + $0x5b0] sm:$0xff]
    %v379 = vld [vmem:[#allocation5 + $0x5b8] sm:$0xff]
    %v380 = vld [vmem:[#allocation5 + $0x5c0] sm:$0xff]
    %v381 = vld [vmem:[#allocation5 + $0x5c8] sm:$0xff]
    %v382 = vld [vmem:[#allocation5 + $0x5d0] sm:$0xff]
    %v383 = vld [vmem:[#allocation5 + $0x5d8] sm:$0xff]
    %v384 = vld [vmem:[#allocation5 + $0x5e0] sm:$0xff]
    %v385 = vld [vmem:[#allocation5 + $0x5e8] sm:$0xff]
    %v386 = vld [vmem:[#allocation5 + $0x5f0] sm:$0xff]
    %v387 = vld [vmem:[#allocation5 + $0x5f8] sm:$0xff]
    %v388 = vld [vmem:[#allocation5 + $0x600] sm:$0xff]
    %v389 = vld [vmem:[#allocation5 + $0x608] sm:$0xff]
    %v390 = vld [vmem:[#allocation5 + $0x610] sm:$0xff]
    %v391 = vld [vmem:[#allocation5 + $0x618] sm:$0xff]
    %v392 = vld [vmem:[#allocation5 + $0x620] sm:$0xff]
    %v393 = vld [vmem:[#allocation5 + $0x628] sm:$0xff]
    %v394 = vld [vmem:[#allocation5 + $0x630] sm:$0xff]
    %v395 = vld [vmem:[#allocation5 + $0x638] sm:$0xff]
    %v396 = vld [vmem:[#allocation5 + $0x640] sm:$0xff]
    %v397 = vld [vmem:[#allocation5 + $0x648] sm:$0xff]
    %v398 = vld [vmem:[#allocation5 + $0x650] sm:$0xff]
    %v399 = vld [vmem:[#allocation5 + $0x658] sm:$0xff]
    %v400 = vld [vmem:[#allocation5 + $0x660] sm:$0xff]
    %v401 = vld [vmem:[#allocation5 + $0x668] sm:$0xff]
    %v402 = vld [vmem:[#allocation5 + $0x670] sm:$0xff]
    %v403 = vld [vmem:[#allocation5 + $0x678] sm:$0xff]
    %v404 = vld [vmem:[#allocation5 + $0x680] sm:$0xff]
    %v405 = vld [vmem:[#allocation5 + $0x688] sm:$0xff]
    %v406 = vld [vmem:[#allocation5 + $0x690] sm:$0xff]
    %v407 = vld [vmem:[#allocation5 + $0x698] sm:$0xff]
    %v408 = vld [vmem:[#allocation5 + $0x6a0] sm:$0xff]
    %v409 = vld [vmem:[#allocation5 + $0x6a8] sm:$0xff]
    %v410 = vld [vmem:[#allocation5 + $0x6b0] sm:$0xff]
    %v411 = vld [vmem:[#allocation5 + $0x6b8] sm:$0xff]
    %v412 = vld [vmem:[#allocation5 + $0x6c0] sm:$0xff]
    %v413 = vld [vmem:[#allocation5 + $0x6c8] sm:$0xff]
    %v414 = vld [vmem:[#allocation5 + $0x6d0] sm:$0xff]
    %v415 = vld [vmem:[#allocation5 + $0x6d8] sm:$0xff]
    %v416 = vld [vmem:[#allocation5 + $0x6e0] sm:$0xff]
    %v417 = vld [vmem:[#allocation5 + $0x6e8] sm:$0xff]
    %v418 = vld [vmem:[#allocation5 + $0x6f0] sm:$0xff]
    %v419 = vld [vmem:[#allocation5 + $0x6f8] sm:$0xff]
    %v420 = vld [vmem:[#allocation5 + $0x700] sm:$0xff]
    %v421 = vld [vmem:[#allocation5 + $0x708] sm:$0xff]
    %v422 = vld [vmem:[#allocation5 + $0x710] sm:$0xff]
    %v423 = vld [vmem:[#allocation5 + $0x718] sm:$0xff]
    %v424 = vld [vmem:[#allocation5 + $0x720] sm:$0xff]
    %v425 = vld [vmem:[#allocation5 + $0x728] sm:$0xff]
    %v426 = vld [vmem:[#allocation5 + $0x730] sm:$0xff]
    %v427 = vld [vmem:[#allocation5 + $0x738] sm:$0xff]
    %v428 = vld [vmem:[#allocation5 + $0x740] sm:$0xff]
    %v429 = vld [vmem:[#allocation5 + $0x748] sm:$0xff]
    %v430 = vld [vmem:[#allocation5 + $0x750] sm:$0xff]
    %v431 = vld [vmem:[#allocation5 + $0x758] sm:$0xff]
    %v432 = vld [vmem:[#allocation5 + $0x760] sm:$0xff]
    %v433 = vld [vmem:[#allocation5 + $0x768] sm:$0xff]
    %v434 = vld [vmem:[#allocation5 + $0x770] sm:$0xff]
    %v435 = vld [vmem:[#allocation5 + $0x778] sm:$0xff]
    %v436 = vld [vmem:[#allocation5 + $0x780] sm:$0xff]
    %v437 = vld [vmem:[#allocation5 + $0x788] sm:$0xff]
    %v438 = vld [vmem:[#allocation5 + $0x790] sm:$0xff]
    %v439 = vld [vmem:[#allocation5 + $0x798] sm:$0xff]
    %v440 = vld [vmem:[#allocation5 + $0x7a0] sm:$0xff]
    %v441 = vld [vmem:[#allocation5 + $0x7a8] sm:$0xff]
    %v442 = vld [vmem:[#allocation5 + $0x7b0] sm:$0xff]
    %v443 = vld [vmem:[#allocation5 + $0x7b8] sm:$0xff]
    %v444 = vld [vmem:[#allocation5 + $0x7c0] sm:$0xff]
    %v445 = vld [vmem:[#allocation5 + $0x7c8] sm:$0xff]
    %v446 = vld [vmem:[#allocation5 + $0x7d0] sm:$0xff]
    %v447 = vld [vmem:[#allocation5 + $0x7d8] sm:$0xff]
    %v448 = vld [vmem:[#allocation5 + $0x7e0] sm:$0xff]
    %v449 = vld [vmem:[#allocation5 + $0x7e8] sm:$0xff]
    %v450 = vld [vmem:[#allocation5 + $0x7f0] sm:$0xff]
    %v451 = vld [vmem:[#allocation5 + $0x7f8] sm:$0xff]
    %v452 = vld [vmem:[#allocation5 + $0x800] sm:$0xff]
    %v453 = vld [vmem:[#allocation5 + $0x808] sm:$0xff]
    %v454 = vld [vmem:[#allocation5 + $0x810] sm:$0xff]
    %v455 = vld [vmem:[#allocation5 + $0x818] sm:$0xff]
    %v456 = vld [vmem:[#allocation5 + $0x820] sm:$0xff]
    %v457 = vld [vmem:[#allocation5 + $0x828] sm:$0xff]
    %v458 = vld [vmem:[#allocation5 + $0x830] sm:$0xff]
    %v459 = vld [vmem:[#allocation7] sm:$0x3]
    %v461 = vperm.slane %v459, 0
    %v462 = vperm.slane %v459, 1
    %v728 = vunpack.c.l.b16 %v196
    %v729 = vunpack.c.h.b16 %v196
    %v730 = vunpack.c.l.b16 %v197
    %v731 = vunpack.c.h.b16 %v197
    %v732 = vunpack.c.l.b16 %v198
    %v733 = vunpack.c.h.b16 %v198
    %v734 = vunpack.c.l.b16 %v199
    %v735 = vunpack.c.h.b16 %v199
    %v736 = vunpack.c.l.b16 %v200
    %v737 = vunpack.c.h.b16 %v200
    %v738 = vunpack.c.l.b16 %v201
    %v739 = vunpack.c.h.b16 %v201
    %v740 = vunpack.c.l.b16 %v202
    %v741 = vunpack.c.h.b16 %v202
    %v742 = vunpack.c.l.b16 %v203
    %v743 = vunpack.c.h.b16 %v203
    %v744 = vunpack.c.l.b16 %v204
    %v745 = vunpack.c.h.b16 %v204
    %v746 = vunpack.c.l.b16 %v205
    %v747 = vunpack.c.h.b16 %v205
    %v748 = vunpack.c.l.b16 %v206
    %v749 = vunpack.c.h.b16 %v206
    %v750 = vunpack.c.l.b16 %v207
    %v751 = vunpack.c.h.b16 %v207
    %v752 = vunpack.c.l.b16 %v208
    %v753 = vunpack.c.h.b16 %v208
    %v754 = vunpack.c.l.b16 %v209
    %v755 = vunpack.c.h.b16 %v209
    %v756 = vunpack.c.l.b16 %v210
    %v757 = vunpack.c.h.b16 %v210
    %v758 = vunpack.c.l.b16 %v211
    %v759 = vunpack.c.h.b16 %v211
    %v760 = vunpack.c.l.b16 %v212
    %v761 = vunpack.c.h.b16 %v212
    %v762 = vunpack.c.l.b16 %v213
    %v763 = vunpack.c.h.b16 %v213
    %v764 = vunpack.c.l.b16 %v214
    %v765 = vunpack.c.h.b16 %v214
    %v766 = vunpack.c.l.b16 %v215
    %v767 = vunpack.c.h.b16 %v215
    %v768 = vunpack.c.l.b16 %v216
    %v769 = vunpack.c.h.b16 %v216
    %v770 = vunpack.c.l.b16 %v217
    %v771 = vunpack.c.h.b16 %v217
    %v772 = vunpack.c.l.b16 %v218
    %v773 = vunpack.c.h.b16 %v218
    %v774 = vunpack.c.l.b16 %v219
    %v775 = vunpack.c.h.b16 %v219
    %v776 = vunpack.c.l.b16 %v220
    %v777 = vunpack.c.h.b16 %v220
    %v778 = vunpack.c.l.b16 %v221
    %v779 = vunpack.c.h.b16 %v221
    %v780 = vunpack.c.l.b16 %v222
    %v781 = vunpack.c.h.b16 %v222
    %v782 = vunpack.c.l.b16 %v223
    %v783 = vunpack.c.h.b16 %v223
    %v784 = vunpack.c.l.b16 %v224
    %v785 = vunpack.c.h.b16 %v224
    %v786 = vunpack.c.l.b16 %v225
    %v787 = vunpack.c.h.b16 %v225
    %v788 = vunpack.c.l.b16 %v226
    %v789 = vunpack.c.h.b16 %v226
    %v790 = vunpack.c.l.b16 %v227
    %v791 = vunpack.c.h.b16 %v227
    %v792 = vunpack.c.l.b16 %v228
    %v793 = vunpack.c.h.b16 %v228
    %v794 = vunpack.c.l.b16 %v229
    %v795 = vunpack.c.h.b16 %v229
    %v796 = vunpack.c.l.b16 %v230
    %v797 = vunpack.c.h.b16 %v230
    %v798 = vunpack.c.l.b16 %v231
    %v799 = vunpack.c.h.b16 %v231
    %v800 = vunpack.c.l.b16 %v232
    %v801 = vunpack.c.h.b16 %v232
    %v802 = vunpack.c.l.b16 %v233
    %v803 = vunpack.c.h.b16 %v233
    %v804 = vunpack.c.l.b16 %v234
    %v805 = vunpack.c.h.b16 %v234
    %v806 = vunpack.c.l.b16 %v235
    %v807 = vunpack.c.h.b16 %v235
    %v808 = vunpack.c.l.b16 %v236
    %v809 = vunpack.c.h.b16 %v236
    %v810 = vunpack.c.l.b16 %v237
    %v811 = vunpack.c.h.b16 %v237
    %v812 = vunpack.c.l.b16 %v238
    %v813 = vunpack.c.h.b16 %v238
    %v814 = vunpack.c.l.b16 %v239
    %v815 = vunpack.c.h.b16 %v239
    %v816 = vunpack.c.l.b16 %v240
    %v817 = vunpack.c.h.b16 %v240
    %v818 = vunpack.c.l.b16 %v241
    %v819 = vunpack.c.h.b16 %v241
    %v820 = vunpack.c.l.b16 %v242
    %v821 = vunpack.c.h.b16 %v242
    %v822 = vunpack.c.l.b16 %v243
    %v823 = vunpack.c.h.b16 %v243
    %v824 = vunpack.c.l.b16 %v244
    %v825 = vunpack.c.h.b16 %v244
    %v826 = vunpack.c.l.b16 %v245
    %v827 = vunpack.c.h.b16 %v245
    %v828 = vunpack.c.l.b16 %v246
    %v829 = vunpack.c.h.b16 %v246
    %v830 = vunpack.c.l.b16 %v247
    %v831 = vunpack.c.h.b16 %v247
    %v832 = vunpack.c.l.b16 %v248
    %v833 = vunpack.c.h.b16 %v248
    %v834 = vunpack.c.l.b16 %v249
    %v835 = vunpack.c.h.b16 %v249
    %v836 = vunpack.c.l.b16 %v250
    %v837 = vunpack.c.h.b16 %v250
    %v838 = vunpack.c.l.b16 %v251
    %v839 = vunpack.c.h.b16 %v251
    %v840 = vunpack.c.l.b16 %v252
    %v841 = vunpack.c.h.b16 %v252
    %v842 = vunpack.c.l.b16 %v253
    %v843 = vunpack.c.h.b16 %v253
    %v844 = vunpack.c.l.b16 %v254
    %v845 = vunpack.c.h.b16 %v254
    %v846 = vunpack.c.l.b16 %v255
    %v847 = vunpack.c.h.b16 %v255
    %v848 = vunpack.c.l.b16 %v256
    %v849 = vunpack.c.h.b16 %v256
    %v850 = vunpack.c.l.b16 %v257
    %v851 = vunpack.c.h.b16 %v257
    %v852 = vunpack.c.l.b16 %v258
    %v853 = vunpack.c.h.b16 %v258
    %v854 = vunpack.c.l.b16 %v259
    %v855 = vunpack.c.h.b16 %v259
    %v856 = vunpack.c.l.b16 %v260
    %v857 = vunpack.c.h.b16 %v260
    %v858 = vunpack.c.l.b16 %v261
    %v859 = vunpack.c.h.b16 %v261
    %v860 = vunpack.c.l.b16 %v262
    %v861 = vunpack.c.h.b16 %v262
    %v862 = vunpack.c.l.b16 %v263
    %v863 = vunpack.c.h.b16 %v263
    %v864 = vunpack.c.l.b16 %v264
    %v865 = vunpack.c.h.b16 %v264
    %v866 = vunpack.c.l.b16 %v265
    %v867 = vunpack.c.h.b16 %v265
    %v868 = vunpack.c.l.b16 %v266
    %v869 = vunpack.c.h.b16 %v266
    %v870 = vunpack.c.l.b16 %v267
    %v871 = vunpack.c.h.b16 %v267
    %v872 = vunpack.c.l.b16 %v268
    %v873 = vunpack.c.h.b16 %v268
    %v874 = vunpack.c.l.b16 %v269
    %v875 = vunpack.c.h.b16 %v269
    %v876 = vunpack.c.l.b16 %v270
    %v877 = vunpack.c.h.b16 %v270
    %v878 = vunpack.c.l.b16 %v271
    %v879 = vunpack.c.h.b16 %v271
    %v880 = vunpack.c.l.b16 %v272
    %v881 = vunpack.c.h.b16 %v272
    %v882 = vunpack.c.l.b16 %v273
    %v883 = vunpack.c.h.b16 %v273
    %v884 = vunpack.c.l.b16 %v274
    %v885 = vunpack.c.h.b16 %v274
    %v886 = vunpack.c.l.b16 %v275
    %v887 = vunpack.c.h.b16 %v275
    %v888 = vunpack.c.l.b16 %v276
    %v889 = vunpack.c.h.b16 %v276
    %v890 = vunpack.c.l.b16 %v277
    %v891 = vunpack.c.h.b16 %v277
    %v892 = vunpack.c.l.b16 %v278
    %v893 = vunpack.c.h.b16 %v278
    %v894 = vunpack.c.l.b16 %v279
    %v895 = vunpack.c.h.b16 %v279
    %v896 = vunpack.c.l.b16 %v280
    %v897 = vunpack.c.h.b16 %v280
    %v898 = vunpack.c.l.b16 %v281
    %v899 = vunpack.c.h.b16 %v281
    %v900 = vunpack.c.l.b16 %v282
    %v901 = vunpack.c.h.b16 %v282
    %v902 = vunpack.c.l.b16 %v283
    %v903 = vunpack.c.h.b16 %v283
    %v904 = vunpack.c.l.b16 %v284
    %v905 = vunpack.c.h.b16 %v284
    %v906 = vunpack.c.l.b16 %v285
    %v907 = vunpack.c.h.b16 %v285
    %v908 = vunpack.c.l.b16 %v286
    %v909 = vunpack.c.h.b16 %v286
    %v910 = vunpack.c.l.b16 %v287
    %v911 = vunpack.c.h.b16 %v287
    %v912 = vunpack.c.l.b16 %v288
    %v913 = vunpack.c.h.b16 %v288
    %v914 = vunpack.c.l.b16 %v289
    %v915 = vunpack.c.h.b16 %v289
    %v916 = vunpack.c.l.b16 %v290
    %v917 = vunpack.c.h.b16 %v290
    %v918 = vunpack.c.l.b16 %v291
    %v919 = vunpack.c.h.b16 %v291
    %v920 = vunpack.c.l.b16 %v292
    %v921 = vunpack.c.h.b16 %v292
    %v922 = vunpack.c.l.b16 %v293
    %v923 = vunpack.c.h.b16 %v293
    %v924 = vunpack.c.l.b16 %v294
    %v925 = vunpack.c.h.b16 %v294
    %v926 = vunpack.c.l.b16 %v295
    %v927 = vunpack.c.h.b16 %v295
    %v928 = vunpack.c.l.b16 %v296
    %v929 = vunpack.c.h.b16 %v296
    %v930 = vunpack.c.l.b16 %v297
    %v931 = vunpack.c.h.b16 %v297
    %v932 = vunpack.c.l.b16 %v298
    %v933 = vunpack.c.h.b16 %v298
    %v934 = vunpack.c.l.b16 %v299
    %v935 = vunpack.c.h.b16 %v299
    %v936 = vunpack.c.l.b16 %v300
    %v937 = vunpack.c.h.b16 %v300
    %v938 = vunpack.c.l.b16 %v301
    %v939 = vunpack.c.h.b16 %v301
    %v940 = vunpack.c.l.b16 %v302
    %v941 = vunpack.c.h.b16 %v302
    %v942 = vunpack.c.l.b16 %v303
    %v943 = vunpack.c.h.b16 %v303
    %v944 = vunpack.c.l.b16 %v304
    %v945 = vunpack.c.h.b16 %v304
    %v946 = vunpack.c.l.b16 %v305
    %v947 = vunpack.c.h.b16 %v305
    %v948 = vunpack.c.l.b16 %v306
    %v949 = vunpack.c.h.b16 %v306
    %v950 = vunpack.c.l.b16 %v307
    %v951 = vunpack.c.h.b16 %v307
    %v952 = vunpack.c.l.b16 %v308
    %v953 = vunpack.c.h.b16 %v308
    %v954 = vunpack.c.l.b16 %v309
    %v955 = vunpack.c.h.b16 %v309
    %v956 = vunpack.c.l.b16 %v310
    %v957 = vunpack.c.h.b16 %v310
    %v958 = vunpack.c.l.b16 %v311
    %v959 = vunpack.c.h.b16 %v311
    %v960 = vunpack.c.l.b16 %v312
    %v961 = vunpack.c.h.b16 %v312
    %v962 = vunpack.c.l.b16 %v313
    %v963 = vunpack.c.h.b16 %v313
    %v964 = vunpack.c.l.b16 %v314
    %v965 = vunpack.c.h.b16 %v314
    %v966 = vunpack.c.l.b16 %v315
    %v967 = vunpack.c.h.b16 %v315
    %v968 = vunpack.c.l.b16 %v316
    %v969 = vunpack.c.h.b16 %v316
    %v970 = vunpack.c.l.b16 %v317
    %v971 = vunpack.c.h.b16 %v317
    %v972 = vunpack.c.l.b16 %v318
    %v973 = vunpack.c.h.b16 %v318
    %v974 = vunpack.c.l.b16 %v319
    %v975 = vunpack.c.h.b16 %v319
    %v976 = vunpack.c.l.b16 %v320
    %v977 = vunpack.c.h.b16 %v320
    %v978 = vunpack.c.l.b16 %v321
    %v979 = vunpack.c.h.b16 %v321
    %v980 = vunpack.c.l.b16 %v322
    %v981 = vunpack.c.h.b16 %v322
    %v982 = vunpack.c.l.b16 %v323
    %v983 = vunpack.c.h.b16 %v323
    %v984 = vunpack.c.l.b16 %v324
    %v985 = vunpack.c.h.b16 %v324
    %v986 = vunpack.c.l.b16 %v325
    %v987 = vunpack.c.h.b16 %v325
    %v988 = vunpack.c.l.b16 %v326
    %v989 = vunpack.c.h.b16 %v326
    %v990 = vunpack.c.l.b16 %v327
    %v991 = vunpack.c.h.b16 %v327
    %v992 = vunpack.c.l.b16 %v328
    %v993 = vunpack.c.h.b16 %v328
    %v994 = vunpack.c.l.b16 %v329
    %v995 = vunpack.c.h.b16 %v329
    %v996 = vunpack.c.l.b16 %v330
    %v997 = vunpack.c.h.b16 %v330
    %v998 = vunpack.c.l.b16 %v331
    %v999 = vunpack.c.h.b16 %v331
    %v1000 = vunpack.c.l.b16 %v332
    %v1001 = vunpack.c.h.b16 %v332
    %v1002 = vunpack.c.l.b16 %v333
    %v1003 = vunpack.c.h.b16 %v333
    %v1004 = vunpack.c.l.b16 %v334
    %v1005 = vunpack.c.h.b16 %v334
    %v1006 = vunpack.c.l.b16 %v335
    %v1007 = vunpack.c.h.b16 %v335
    %v1008 = vunpack.c.l.b16 %v336
    %v1009 = vunpack.c.h.b16 %v336
    %v1010 = vunpack.c.l.b16 %v337
    %v1011 = vunpack.c.h.b16 %v337
    %v1012 = vunpack.c.l.b16 %v338
    %v1013 = vunpack.c.h.b16 %v338
    %v1014 = vunpack.c.l.b16 %v339
    %v1015 = vunpack.c.h.b16 %v339
    %v1016 = vunpack.c.l.b16 %v340
    %v1017 = vunpack.c.h.b16 %v340
    %v1018 = vunpack.c.l.b16 %v341
    %v1019 = vunpack.c.h.b16 %v341
    %v1020 = vunpack.c.l.b16 %v342
    %v1021 = vunpack.c.h.b16 %v342
    %v1022 = vunpack.c.l.b16 %v343
    %v1023 = vunpack.c.h.b16 %v343
    %v1024 = vunpack.c.l.b16 %v344
    %v1025 = vunpack.c.h.b16 %v344
    %v1026 = vunpack.c.l.b16 %v345
    %v1027 = vunpack.c.h.b16 %v345
    %v1028 = vunpack.c.l.b16 %v346
    %v1029 = vunpack.c.h.b16 %v346
    %v1030 = vunpack.c.l.b16 %v347
    %v1031 = vunpack.c.h.b16 %v347
    %v1032 = vunpack.c.l.b16 %v348
    %v1033 = vunpack.c.h.b16 %v348
    %v1034 = vunpack.c.l.b16 %v349
    %v1035 = vunpack.c.h.b16 %v349
    %v1036 = vunpack.c.l.b16 %v350
    %v1037 = vunpack.c.h.b16 %v350
    %v1038 = vunpack.c.l.b16 %v351
    %v1039 = vunpack.c.h.b16 %v351
    %v1040 = vunpack.c.l.b16 %v352
    %v1041 = vunpack.c.h.b16 %v352
    %v1042 = vunpack.c.l.b16 %v353
    %v1043 = vunpack.c.h.b16 %v353
    %v1044 = vunpack.c.l.b16 %v354
    %v1045 = vunpack.c.h.b16 %v354
    %v1046 = vunpack.c.l.b16 %v355
    %v1047 = vunpack.c.h.b16 %v355
    %v1048 = vunpack.c.l.b16 %v356
    %v1049 = vunpack.c.h.b16 %v356
    %v1050 = vunpack.c.l.b16 %v357
    %v1051 = vunpack.c.h.b16 %v357
    %v1052 = vunpack.c.l.b16 %v358
    %v1053 = vunpack.c.h.b16 %v358
    %v1054 = vunpack.c.l.b16 %v359
    %v1055 = vunpack.c.h.b16 %v359
    %v1056 = vunpack.c.l.b16 %v360
    %v1057 = vunpack.c.h.b16 %v360
    %v1058 = vunpack.c.l.b16 %v361
    %v1059 = vunpack.c.h.b16 %v361
    %v1060 = vunpack.c.l.b16 %v362
    %v1061 = vunpack.c.h.b16 %v362
    %v1062 = vunpack.c.l.b16 %v363
    %v1063 = vunpack.c.h.b16 %v363
    %v1064 = vunpack.c.l.b16 %v364
    %v1065 = vunpack.c.h.b16 %v364
    %v1066 = vunpack.c.l.b16 %v365
    %v1067 = vunpack.c.h.b16 %v365
    %v1068 = vunpack.c.l.b16 %v366
    %v1069 = vunpack.c.h.b16 %v366
    %v1070 = vunpack.c.l.b16 %v367
    %v1071 = vunpack.c.h.b16 %v367
    %v1072 = vunpack.c.l.b16 %v368
    %v1073 = vunpack.c.h.b16 %v368
    %v1074 = vunpack.c.l.b16 %v369
    %v1075 = vunpack.c.h.b16 %v369
    %v1076 = vunpack.c.l.b16 %v370
    %v1077 = vunpack.c.h.b16 %v370
    %v1078 = vunpack.c.l.b16 %v371
    %v1079 = vunpack.c.h.b16 %v371
    %v1080 = vunpack.c.l.b16 %v372
    %v1081 = vunpack.c.h.b16 %v372
    %v1082 = vunpack.c.l.b16 %v373
    %v1083 = vunpack.c.h.b16 %v373
    %v1084 = vunpack.c.l.b16 %v374
    %v1085 = vunpack.c.h.b16 %v374
    %v1086 = vunpack.c.l.b16 %v375
    %v1087 = vunpack.c.h.b16 %v375
    %v1088 = vunpack.c.l.b16 %v376
    %v1089 = vunpack.c.h.b16 %v376
    %v1090 = vunpack.c.l.b16 %v377
    %v1091 = vunpack.c.h.b16 %v377
    %v1092 = vunpack.c.l.b16 %v378
    %v1093 = vunpack.c.h.b16 %v378
    %v1094 = vunpack.c.l.b16 %v379
    %v1095 = vunpack.c.h.b16 %v379
    %v1096 = vunpack.c.l.b16 %v380
    %v1097 = vunpack.c.h.b16 %v380
    %v1098 = vunpack.c.l.b16 %v381
    %v1099 = vunpack.c.h.b16 %v381
    %v1100 = vunpack.c.l.b16 %v382
    %v1101 = vunpack.c.h.b16 %v382
    %v1102 = vunpack.c.l.b16 %v383
    %v1103 = vunpack.c.h.b16 %v383
    %v1104 = vunpack.c.l.b16 %v384
    %v1105 = vunpack.c.h.b16 %v384
    %v1106 = vunpack.c.l.b16 %v385
    %v1107 = vunpack.c.h.b16 %v385
    %v1108 = vunpack.c.l.b16 %v386
    %v1109 = vunpack.c.h.b16 %v386
    %v1110 = vunpack.c.l.b16 %v387
    %v1111 = vunpack.c.h.b16 %v387
    %v1112 = vunpack.c.l.b16 %v388
    %v1113 = vunpack.c.h.b16 %v388
    %v1114 = vunpack.c.l.b16 %v389
    %v1115 = vunpack.c.h.b16 %v389
    %v1116 = vunpack.c.l.b16 %v390
    %v1117 = vunpack.c.h.b16 %v390
    %v1118 = vunpack.c.l.b16 %v391
    %v1119 = vunpack.c.h.b16 %v391
    %v1120 = vunpack.c.l.b16 %v392
    %v1121 = vunpack.c.h.b16 %v392
    %v1122 = vunpack.c.l.b16 %v393
    %v1123 = vunpack.c.h.b16 %v393
    %v1124 = vunpack.c.l.b16 %v394
    %v1125 = vunpack.c.h.b16 %v394
    %v1126 = vunpack.c.l.b16 %v395
    %v1127 = vunpack.c.h.b16 %v395
    %v1128 = vunpack.c.l.b16 %v396
    %v1129 = vunpack.c.h.b16 %v396
    %v1130 = vunpack.c.l.b16 %v397
    %v1131 = vunpack.c.h.b16 %v397
    %v1132 = vunpack.c.l.b16 %v398
    %v1133 = vunpack.c.h.b16 %v398
    %v1134 = vunpack.c.l.b16 %v399
    %v1135 = vunpack.c.h.b16 %v399
    %v1136 = vunpack.c.l.b16 %v400
    %v1137 = vunpack.c.h.b16 %v400
    %v1138 = vunpack.c.l.b16 %v401
    %v1139 = vunpack.c.h.b16 %v401
    %v1140 = vunpack.c.l.b16 %v402
    %v1141 = vunpack.c.h.b16 %v402
    %v1142 = vunpack.c.l.b16 %v403
    %v1143 = vunpack.c.h.b16 %v403
    %v1144 = vunpack.c.l.b16 %v404
    %v1145 = vunpack.c.h.b16 %v404
    %v1146 = vunpack.c.l.b16 %v405
    %v1147 = vunpack.c.h.b16 %v405
    %v1148 = vunpack.c.l.b16 %v406
    %v1149 = vunpack.c.h.b16 %v406
    %v1150 = vunpack.c.l.b16 %v407
    %v1151 = vunpack.c.h.b16 %v407
    %v1152 = vunpack.c.l.b16 %v408
    %v1153 = vunpack.c.h.b16 %v408
    %v1154 = vunpack.c.l.b16 %v409
    %v1155 = vunpack.c.h.b16 %v409
    %v1156 = vunpack.c.l.b16 %v410
    %v1157 = vunpack.c.h.b16 %v410
    %v1158 = vunpack.c.l.b16 %v411
    %v1159 = vunpack.c.h.b16 %v411
    %v1160 = vunpack.c.l.b16 %v412
    %v1161 = vunpack.c.h.b16 %v412
    %v1162 = vunpack.c.l.b16 %v413
    %v1163 = vunpack.c.h.b16 %v413
    %v1164 = vunpack.c.l.b16 %v414
    %v1165 = vunpack.c.h.b16 %v414
    %v1166 = vunpack.c.l.b16 %v415
    %v1167 = vunpack.c.h.b16 %v415
    %v1168 = vunpack.c.l.b16 %v416
    %v1169 = vunpack.c.h.b16 %v416
    %v1170 = vunpack.c.l.b16 %v417
    %v1171 = vunpack.c.h.b16 %v417
    %v1172 = vunpack.c.l.b16 %v418
    %v1173 = vunpack.c.h.b16 %v418
    %v1174 = vunpack.c.l.b16 %v419
    %v1175 = vunpack.c.h.b16 %v419
    %v1176 = vunpack.c.l.b16 %v420
    %v1177 = vunpack.c.h.b16 %v420
    %v1178 = vunpack.c.l.b16 %v421
    %v1179 = vunpack.c.h.b16 %v421
    %v1180 = vunpack.c.l.b16 %v422
    %v1181 = vunpack.c.h.b16 %v422
    %v1182 = vunpack.c.l.b16 %v423
    %v1183 = vunpack.c.h.b16 %v423
    %v1184 = vunpack.c.l.b16 %v424
    %v1185 = vunpack.c.h.b16 %v424
    %v1186 = vunpack.c.l.b16 %v425
    %v1187 = vunpack.c.h.b16 %v425
    %v1188 = vunpack.c.l.b16 %v426
    %v1189 = vunpack.c.h.b16 %v426
    %v1190 = vunpack.c.l.b16 %v427
    %v1191 = vunpack.c.h.b16 %v427
    %v1192 = vunpack.c.l.b16 %v428
    %v1193 = vunpack.c.h.b16 %v428
    %v1194 = vunpack.c.l.b16 %v429
    %v1195 = vunpack.c.h.b16 %v429
    %v1196 = vunpack.c.l.b16 %v430
    %v1197 = vunpack.c.h.b16 %v430
    %v1198 = vunpack.c.l.b16 %v431
    %v1199 = vunpack.c.h.b16 %v431
    %v1200 = vunpack.c.l.b16 %v432
    %v1201 = vunpack.c.h.b16 %v432
    %v1202 = vunpack.c.l.b16 %v433
    %v1203 = vunpack.c.h.b16 %v433
    %v1204 = vunpack.c.l.b16 %v434
    %v1205 = vunpack.c.h.b16 %v434
    %v1206 = vunpack.c.l.b16 %v435
    %v1207 = vunpack.c.h.b16 %v435
    %v1208 = vunpack.c.l.b16 %v436
    %v1209 = vunpack.c.h.b16 %v436
    %v1210 = vunpack.c.l.b16 %v437
    %v1211 = vunpack.c.h.b16 %v437
    %v1212 = vunpack.c.l.b16 %v438
    %v1213 = vunpack.c.h.b16 %v438
    %v1214 = vunpack.c.l.b16 %v439
    %v1215 = vunpack.c.h.b16 %v439
    %v1216 = vunpack.c.l.b16 %v440
    %v1217 = vunpack.c.h.b16 %v440
    %v1218 = vunpack.c.l.b16 %v441
    %v1219 = vunpack.c.h.b16 %v441
    %v1220 = vunpack.c.l.b16 %v442
    %v1221 = vunpack.c.h.b16 %v442
    %v1222 = vunpack.c.l.b16 %v443
    %v1223 = vunpack.c.h.b16 %v443
    %v1224 = vunpack.c.l.b16 %v444
    %v1225 = vunpack.c.h.b16 %v444
    %v1226 = vunpack.c.l.b16 %v445
    %v1227 = vunpack.c.h.b16 %v445
    %v1228 = vunpack.c.l.b16 %v446
    %v1229 = vunpack.c.h.b16 %v446
    %v1230 = vunpack.c.l.b16 %v447
    %v1231 = vunpack.c.h.b16 %v447
    %v1232 = vunpack.c.l.b16 %v448
    %v1233 = vunpack.c.h.b16 %v448
    %v1234 = vunpack.c.l.b16 %v449
    %v1235 = vunpack.c.h.b16 %v449
    %v1236 = vunpack.c.l.b16 %v450
    %v1237 = vunpack.c.h.b16 %v450
    %v1238 = vunpack.c.l.b16 %v451
    %v1239 = vunpack.c.h.b16 %v451
    %v1240 = vunpack.c.l.b16 %v452
    %v1241 = vunpack.c.h.b16 %v452
    %v1242 = vunpack.c.l.b16 %v453
    %v1243 = vunpack.c.h.b16 %v453
    %v1244 = vunpack.c.l.b16 %v454
    %v1245 = vunpack.c.h.b16 %v454
    %v1246 = vunpack.c.l.b16 %v455
    %v1247 = vunpack.c.h.b16 %v455
    %v1248 = vunpack.c.l.b16 %v456
    %v1249 = vunpack.c.h.b16 %v456
    %v1250 = vunpack.c.l.b16 %v457
    %v1251 = vunpack.c.h.b16 %v457
    %v1252 = vunpack.c.l.b16 %v458
    %v1253 = vunpack.c.h.b16 %v458
    %v1254 = vpack.c.b16 %v730, %v728
    %v1255 = vpack.c.b16 %v731, %v729
    %v1256 = vpack.c.b16 %v734, %v732
    %v1257 = vpack.c.b16 %v735, %v733
    %v1258 = vpack.c.b16 %v738, %v736
    %v1259 = vpack.c.b16 %v739, %v737
    %v1260 = vpack.c.b16 %v742, %v740
    %v1261 = vpack.c.b16 %v743, %v741
    %v1262 = vpack.c.b16 %v746, %v744
    %v1263 = vpack.c.b16 %v747, %v745
    %v1264 = vpack.c.b16 %v750, %v748
    %v1265 = vpack.c.b16 %v751, %v749
    %v1266 = vpack.c.b16 %v754, %v752
    %v1267 = vpack.c.b16 %v755, %v753
    %v1268 = vpack.c.b16 %v758, %v756
    %v1269 = vpack.c.b16 %v759, %v757
    %v1270 = vpack.c.b16 %v762, %v760
    %v1271 = vpack.c.b16 %v763, %v761
    %v1272 = vpack.c.b16 %v766, %v764
    %v1273 = vpack.c.b16 %v767, %v765
    %v1274 = vpack.c.b16 %v770, %v768
    %v1275 = vpack.c.b16 %v771, %v769
    %v1276 = vpack.c.b16 %v774, %v772
    %v1277 = vpack.c.b16 %v775, %v773
    %v1278 = vpack.c.b16 %v778, %v776
    %v1279 = vpack.c.b16 %v779, %v777
    %v1280 = vpack.c.b16 %v782, %v780
    %v1281 = vpack.c.b16 %v783, %v781
    %v1282 = vpack.c.b16 %v786, %v784
    %v1283 = vpack.c.b16 %v787, %v785
    %v1284 = vpack.c.b16 %v790, %v788
    %v1285 = vpack.c.b16 %v791, %v789
    %v1286 = vpack.c.b16 %v794, %v792
    %v1287 = vpack.c.b16 %v795, %v793
    %v1288 = vpack.c.b16 %v798, %v796
    %v1289 = vpack.c.b16 %v799, %v797
    %v1290 = vpack.c.b16 %v802, %v800
    %v1291 = vpack.c.b16 %v803, %v801
    %v1292 = vpack.c.b16 %v806, %v804
    %v1293 = vpack.c.b16 %v807, %v805
    %v1294 = vpack.c.b16 %v810, %v808
    %v1295 = vpack.c.b16 %v811, %v809
    %v1296 = vpack.c.b16 %v814, %v812
    %v1297 = vpack.c.b16 %v815, %v813
    %v1298 = vpack.c.b16 %v818, %v816
    %v1299 = vpack.c.b16 %v819, %v817
    %v1300 = vpack.c.b16 %v822, %v820
    %v1301 = vpack.c.b16 %v823, %v821
    %v1302 = vpack.c.b16 %v826, %v824
    %v1303 = vpack.c.b16 %v827, %v825
    %v1304 = vpack.c.b16 %v830, %v828
    %v1305 = vpack.c.b16 %v831, %v829
    %v1306 = vpack.c.b16 %v834, %v832
    %v1307 = vpack.c.b16 %v835, %v833
    %v1308 = vpack.c.b16 %v838, %v836
    %v1309 = vpack.c.b16 %v839, %v837
    %v1310 = vpack.c.b16 %v842, %v840
    %v1311 = vpack.c.b16 %v843, %v841
    %v1312 = vpack.c.b16 %v846, %v844
    %v1313 = vpack.c.b16 %v847, %v845
    %v1314 = vpack.c.b16 %v850, %v848
    %v1315 = vpack.c.b16 %v851, %v849
    %v1316 = vpack.c.b16 %v854, %v852
    %v1317 = vpack.c.b16 %v855, %v853
    %v1318 = vpack.c.b16 %v858, %v856
    %v1319 = vpack.c.b16 %v859, %v857
    %v1320 = vpack.c.b16 %v862, %v860
    %v1321 = vpack.c.b16 %v863, %v861
    %v1322 = vpack.c.b16 %v866, %v864
    %v1323 = vpack.c.b16 %v867, %v865
    %v1324 = vpack.c.b16 %v870, %v868
    %v1325 = vpack.c.b16 %v871, %v869
    %v1326 = vpack.c.b16 %v874, %v872
    %v1327 = vpack.c.b16 %v875, %v873
    %v1328 = vpack.c.b16 %v878, %v876
    %v1329 = vpack.c.b16 %v879, %v877
    %v1330 = vpack.c.b16 %v882, %v880
    %v1331 = vpack.c.b16 %v883, %v881
    %v1332 = vpack.c.b16 %v886, %v884
    %v1333 = vpack.c.b16 %v887, %v885
    %v1334 = vpack.c.b16 %v890, %v888
    %v1335 = vpack.c.b16 %v891, %v889
    %v1336 = vpack.c.b16 %v894, %v892
    %v1337 = vpack.c.b16 %v895, %v893
    %v1338 = vpack.c.b16 %v898, %v896
    %v1339 = vpack.c.b16 %v899, %v897
    %v1340 = vpack.c.b16 %v902, %v900
    %v1341 = vpack.c.b16 %v903, %v901
    %v1342 = vpack.c.b16 %v906, %v904
    %v1343 = vpack.c.b16 %v907, %v905
    %v1344 = vpack.c.b16 %v910, %v908
    %v1345 = vpack.c.b16 %v911, %v909
    %v1346 = vpack.c.b16 %v914, %v912
    %v1347 = vpack.c.b16 %v915, %v913
    %v1348 = vpack.c.b16 %v918, %v916
    %v1349 = vpack.c.b16 %v919, %v917
    %v1350 = vpack.c.b16 %v922, %v920
    %v1351 = vpack.c.b16 %v923, %v921
    %v1352 = vpack.c.b16 %v926, %v924
    %v1353 = vpack.c.b16 %v927, %v925
    %v1354 = vpack.c.b16 %v930, %v928
    %v1355 = vpack.c.b16 %v931, %v929
    %v1356 = vpack.c.b16 %v934, %v932
    %v1357 = vpack.c.b16 %v935, %v933
    %v1358 = vpack.c.b16 %v938, %v936
    %v1359 = vpack.c.b16 %v939, %v937
    %v1360 = vpack.c.b16 %v942, %v940
    %v1361 = vpack.c.b16 %v943, %v941
    %v1362 = vpack.c.b16 %v946, %v944
    %v1363 = vpack.c.b16 %v947, %v945
    %v1364 = vpack.c.b16 %v950, %v948
    %v1365 = vpack.c.b16 %v951, %v949
    %v1366 = vpack.c.b16 %v954, %v952
    %v1367 = vpack.c.b16 %v955, %v953
    %v1368 = vpack.c.b16 %v958, %v956
    %v1369 = vpack.c.b16 %v959, %v957
    %v1370 = vpack.c.b16 %v962, %v960
    %v1371 = vpack.c.b16 %v963, %v961
    %v1372 = vpack.c.b16 %v966, %v964
    %v1373 = vpack.c.b16 %v967, %v965
    %v1374 = vpack.c.b16 %v970, %v968
    %v1375 = vpack.c.b16 %v971, %v969
    %v1376 = vpack.c.b16 %v974, %v972
    %v1377 = vpack.c.b16 %v975, %v973
    %v1378 = vpack.c.b16 %v978, %v976
    %v1379 = vpack.c.b16 %v979, %v977
    %v1380 = vpack.c.b16 %v982, %v980
    %v1381 = vpack.c.b16 %v983, %v981
    %v1382 = vpack.c.b16 %v986, %v984
    %v1383 = vpack.c.b16 %v987, %v985
    %v1384 = vpack.c.b16 %v990, %v988
    %v1385 = vpack.c.b16 %v991, %v989
    %v1386 = vpack.c.b16 %v994, %v992
    %v1387 = vpack.c.b16 %v995, %v993
    %v1388 = vpack.c.b16 %v998, %v996
    %v1389 = vpack.c.b16 %v999, %v997
    %v1390 = vpack.c.b16 %v1002, %v1000
    %v1391 = vpack.c.b16 %v1003, %v1001
    %v1392 = vpack.c.b16 %v1006, %v1004
    %v1393 = vpack.c.b16 %v1007, %v1005
    %v1394 = vpack.c.b16 %v1010, %v1008
    %v1395 = vpack.c.b16 %v1011, %v1009
    %v1396 = vpack.c.b16 %v1014, %v1012
    %v1397 = vpack.c.b16 %v1015, %v1013
    %v1398 = vpack.c.b16 %v1018, %v1016
    %v1399 = vpack.c.b16 %v1019, %v1017
    %v1400 = vpack.c.b16 %v1022, %v1020
    %v1401 = vpack.c.b16 %v1023, %v1021
    %v1402 = vpack.c.b16 %v1026, %v1024
    %v1403 = vpack.c.b16 %v1027, %v1025
    %v1404 = vpack.c.b16 %v1030, %v1028
    %v1405 = vpack.c.b16 %v1031, %v1029
    %v1406 = vpack.c.b16 %v1034, %v1032
    %v1407 = vpack.c.b16 %v1035, %v1033
    %v1408 = vpack.c.b16 %v1038, %v1036
    %v1409 = vpack.c.b16 %v1039, %v1037
    %v1410 = vpack.c.b16 %v1042, %v1040
    %v1411 = vpack.c.b16 %v1043, %v1041
    %v1412 = vpack.c.b16 %v1046, %v1044
    %v1413 = vpack.c.b16 %v1047, %v1045
    %v1414 = vpack.c.b16 %v1050, %v1048
    %v1415 = vpack.c.b16 %v1051, %v1049
    %v1416 = vpack.c.b16 %v1054, %v1052
    %v1417 = vpack.c.b16 %v1055, %v1053
    %v1418 = vpack.c.b16 %v1058, %v1056
    %v1419 = vpack.c.b16 %v1059, %v1057
    %v1420 = vpack.c.b16 %v1062, %v1060
    %v1421 = vpack.c.b16 %v1063, %v1061
    %v1422 = vpack.c.b16 %v1066, %v1064
    %v1423 = vpack.c.b16 %v1067, %v1065
    %v1424 = vpack.c.b16 %v1070, %v1068
    %v1425 = vpack.c.b16 %v1071, %v1069
    %v1426 = vpack.c.b16 %v1074, %v1072
    %v1427 = vpack.c.b16 %v1075, %v1073
    %v1428 = vpack.c.b16 %v1078, %v1076
    %v1429 = vpack.c.b16 %v1079, %v1077
    %v1430 = vpack.c.b16 %v1082, %v1080
    %v1431 = vpack.c.b16 %v1083, %v1081
    %v1432 = vpack.c.b16 %v1086, %v1084
    %v1433 = vpack.c.b16 %v1087, %v1085
    %v1434 = vpack.c.b16 %v1090, %v1088
    %v1435 = vpack.c.b16 %v1091, %v1089
    %v1436 = vpack.c.b16 %v1094, %v1092
    %v1437 = vpack.c.b16 %v1095, %v1093
    %v1438 = vpack.c.b16 %v1098, %v1096
    %v1439 = vpack.c.b16 %v1099, %v1097
    %v1440 = vpack.c.b16 %v1102, %v1100
    %v1441 = vpack.c.b16 %v1103, %v1101
    %v1442 = vpack.c.b16 %v1106, %v1104
    %v1443 = vpack.c.b16 %v1107, %v1105
    %v1444 = vpack.c.b16 %v1110, %v1108
    %v1445 = vpack.c.b16 %v1111, %v1109
    %v1446 = vpack.c.b16 %v1114, %v1112
    %v1447 = vpack.c.b16 %v1115, %v1113
    %v1448 = vpack.c.b16 %v1118, %v1116
    %v1449 = vpack.c.b16 %v1119, %v1117
    %v1450 = vpack.c.b16 %v1122, %v1120
    %v1451 = vpack.c.b16 %v1123, %v1121
    %v1452 = vpack.c.b16 %v1126, %v1124
    %v1453 = vpack.c.b16 %v1127, %v1125
    %v1454 = vpack.c.b16 %v1130, %v1128
    %v1455 = vpack.c.b16 %v1131, %v1129
    %v1456 = vpack.c.b16 %v1134, %v1132
    %v1457 = vpack.c.b16 %v1135, %v1133
    %v1458 = vpack.c.b16 %v1138, %v1136
    %v1459 = vpack.c.b16 %v1139, %v1137
    %v1460 = vpack.c.b16 %v1142, %v1140
    %v1461 = vpack.c.b16 %v1143, %v1141
    %v1462 = vpack.c.b16 %v1146, %v1144
    %v1463 = vpack.c.b16 %v1147, %v1145
    %v1464 = vpack.c.b16 %v1150, %v1148
    %v1465 = vpack.c.b16 %v1151, %v1149
    %v1466 = vpack.c.b16 %v1154, %v1152
    %v1467 = vpack.c.b16 %v1155, %v1153
    %v1468 = vpack.c.b16 %v1158, %v1156
    %v1469 = vpack.c.b16 %v1159, %v1157
    %v1470 = vpack.c.b16 %v1162, %v1160
    %v1471 = vpack.c.b16 %v1163, %v1161
    %v1472 = vpack.c.b16 %v1166, %v1164
    %v1473 = vpack.c.b16 %v1167, %v1165
    %v1474 = vpack.c.b16 %v1170, %v1168
    %v1475 = vpack.c.b16 %v1171, %v1169
    %v1476 = vpack.c.b16 %v1174, %v1172
    %v1477 = vpack.c.b16 %v1175, %v1173
    %v1478 = vpack.c.b16 %v1178, %v1176
    %v1479 = vpack.c.b16 %v1179, %v1177
    %v1480 = vpack.c.b16 %v1182, %v1180
    %v1481 = vpack.c.b16 %v1183, %v1181
    %v1482 = vpack.c.b16 %v1186, %v1184
    %v1483 = vpack.c.b16 %v1187, %v1185
    %v1484 = vpack.c.b16 %v1190, %v1188
    %v1485 = vpack.c.b16 %v1191, %v1189
    %v1486 = vpack.c.b16 %v1194, %v1192
    %v1487 = vpack.c.b16 %v1195, %v1193
    %v1488 = vpack.c.b16 %v1198, %v1196
    %v1489 = vpack.c.b16 %v1199, %v1197
    %v1490 = vpack.c.b16 %v1202, %v1200
    %v1491 = vpack.c.b16 %v1203, %v1201
    %v1492 = vpack.c.b16 %v1206, %v1204
    %v1493 = vpack.c.b16 %v1207, %v1205
    %v1494 = vpack.c.b16 %v1210, %v1208
    %v1495 = vpack.c.b16 %v1211, %v1209
    %v1496 = vpack.c.b16 %v1214, %v1212
    %v1497 = vpack.c.b16 %v1215, %v1213
    %v1498 = vpack.c.b16 %v1218, %v1216
    %v1499 = vpack.c.b16 %v1219, %v1217
    %v1500 = vpack.c.b16 %v1222, %v1220
    %v1501 = vpack.c.b16 %v1223, %v1221
    %v1502 = vpack.c.b16 %v1226, %v1224
    %v1503 = vpack.c.b16 %v1227, %v1225
    %v1504 = vpack.c.b16 %v1230, %v1228
    %v1505 = vpack.c.b16 %v1231, %v1229
    %v1506 = vpack.c.b16 %v1234, %v1232
    %v1507 = vpack.c.b16 %v1235, %v1233
    %v1508 = vpack.c.b16 %v1238, %v1236
    %v1509 = vpack.c.b16 %v1239, %v1237
    %v1510 = vpack.c.b16 %v1242, %v1240
    %v1511 = vpack.c.b16 %v1243, %v1241
    %v1512 = vpack.c.b16 %v1246, %v1244
    %v1513 = vpack.c.b16 %v1247, %v1245
    %v1514 = vpack.c.b16 %v1250, %v1248
    %v1515 = vpack.c.b16 %v1251, %v1249
    %v1516 = vpack.c.b16 %v1252, %v1252
    %v1517 = vpack.c.b16 %v1253, %v1253
    %vm1780 = vcmask 449536
    %v1782 = vsel %vm1780, %v195, 0
    %vm1784 = vcmask 1042432
    %vm1785 = vcmask 1043456
    %v1786 = vsel %vm1784, 4294967295, 65535
    %v1787 = vsel %vm1785, %v1786, 0
    %v1789 = vand.u32 %v1516, %v1787
    %v1792 = vand.u32 %v1517, %v1787
    %1794 = vmatpush.bf16.msra.mxu0 %v1268
    %1795 = vmatpush.bf16.msra.mxu0 %v1266
    %1796 = vmatpush.bf16.msra.mxu0 %v1264
    %1797 = vmatpush.bf16.msra.mxu0 %v1262
    %1798 = vmatpush.bf16.msra.mxu0 %v1260
    %1799 = vmatpush.bf16.msra.mxu0 %v1258
    %1800 = vmatpush.bf16.msra.mxu0 %v1256
    %1801 = vmatpush.bf16.msra.mxu0 %v1254
    %1802 = vmatmul.bf16.gmra.mxu0 %v179
    %v1803 = vpop.f32.mrf.mxu0
    %v1804 = vadd.f32 %v461, %v1803
    %v1805 = vpop.f32.mrf.mxu0
    %1806 = vdwg.mxu0
    %1807 = vmatpush.bf16.msra.mxu0 %v1284
    %1808 = vmatpush.bf16.msra.mxu0 %v1282
    %1809 = vmatpush.bf16.msra.mxu0 %v1280
    %1810 = vmatpush.bf16.msra.mxu0 %v1278
    %1811 = vmatpush.bf16.msra.mxu0 %v1276
    %1812 = vmatpush.bf16.msra.mxu0 %v1274
    %1813 = vmatpush.bf16.msra.mxu0 %v1272
    %1814 = vmatpush.bf16.msra.mxu0 %v1270
    %1815 = vmatmul.bf16.gmra.mxu0 %v180
    %v1816 = vpop.f32.mrf.mxu0
    %v1817 = vadd.f32 %v1804, %v1816
    %v1818 = vpop.f32.mrf.mxu0
    %1819 = vdwg.mxu0
    %1820 = vmatpush.bf16.msra.mxu0 %v1300
    %1821 = vmatpush.bf16.msra.mxu0 %v1298
    %1822 = vmatpush.bf16.msra.mxu0 %v1296
    %1823 = vmatpush.bf16.msra.mxu0 %v1294
    %1824 = vmatpush.bf16.msra.mxu0 %v1292
    %1825 = vmatpush.bf16.msra.mxu0 %v1290
    %1826 = vmatpush.bf16.msra.mxu0 %v1288
    %1827 = vmatpush.bf16.msra.mxu0 %v1286
    %1828 = vmatmul.bf16.gmra.mxu0 %v181
    %v1829 = vpop.f32.mrf.mxu0
    %v1830 = vadd.f32 %v1817, %v1829
    %v1831 = vpop.f32.mrf.mxu0
    %1832 = vdwg.mxu0
    %1833 = vmatpush.bf16.msra.mxu0 %v1316
    %1834 = vmatpush.bf16.msra.mxu0 %v1314
    %1835 = vmatpush.bf16.msra.mxu0 %v1312
    %1836 = vmatpush.bf16.msra.mxu0 %v1310
    %1837 = vmatpush.bf16.msra.mxu0 %v1308
    %1838 = vmatpush.bf16.msra.mxu0 %v1306
    %1839 = vmatpush.bf16.msra.mxu0 %v1304
    %1840 = vmatpush.bf16.msra.mxu0 %v1302
    %1841 = vmatmul.bf16.gmra.mxu0 %v182
    %v1842 = vpop.f32.mrf.mxu0
    %v1843 = vadd.f32 %v1830, %v1842
    %v1844 = vpop.f32.mrf.mxu0
    %1845 = vdwg.mxu0
    %1846 = vmatpush.bf16.msra.mxu0 %v1332
    %1847 = vmatpush.bf16.msra.mxu0 %v1330
    %1848 = vmatpush.bf16.msra.mxu0 %v1328
    %1849 = vmatpush.bf16.msra.mxu0 %v1326
    %1850 = vmatpush.bf16.msra.mxu0 %v1324
    %1851 = vmatpush.bf16.msra.mxu0 %v1322
    %1852 = vmatpush.bf16.msra.mxu0 %v1320
    %1853 = vmatpush.bf16.msra.mxu0 %v1318
    %1854 = vmatmul.bf16.gmra.mxu0 %v183
    %v1855 = vpop.f32.mrf.mxu0
    %v1856 = vadd.f32 %v1843, %v1855
    %v1857 = vpop.f32.mrf.mxu0
    %1858 = vdwg.mxu0
    %1859 = vmatpush.bf16.msra.mxu0 %v1348
    %1860 = vmatpush.bf16.msra.mxu0 %v1346
    %1861 = vmatpush.bf16.msra.mxu0 %v1344
    %1862 = vmatpush.bf16.msra.mxu0 %v1342
    %1863 = vmatpush.bf16.msra.mxu0 %v1340
    %1864 = vmatpush.bf16.msra.mxu0 %v1338
    %1865 = vmatpush.bf16.msra.mxu0 %v1336
    %1866 = vmatpush.bf16.msra.mxu0 %v1334
    %1867 = vmatmul.bf16.gmra.mxu0 %v184
    %v1868 = vpop.f32.mrf.mxu0
    %v1869 = vadd.f32 %v1856, %v1868
    %v1870 = vpop.f32.mrf.mxu0
    %1871 = vdwg.mxu0
    %1872 = vmatpush.bf16.msra.mxu0 %v1364
    %1873 = vmatpush.bf16.msra.mxu0 %v1362
    %1874 = vmatpush.bf16.msra.mxu0 %v1360
    %1875 = vmatpush.bf16.msra.mxu0 %v1358
    %1876 = vmatpush.bf16.msra.mxu0 %v1356
    %1877 = vmatpush.bf16.msra.mxu0 %v1354
    %1878 = vmatpush.bf16.msra.mxu0 %v1352
    %1879 = vmatpush.bf16.msra.mxu0 %v1350
    %1880 = vmatmul.bf16.gmra.mxu0 %v185
    %v1881 = vpop.f32.mrf.mxu0
    %v1882 = vadd.f32 %v1869, %v1881
    %v1883 = vpop.f32.mrf.mxu0
    %1884 = vdwg.mxu0
    %1885 = vmatpush.bf16.msra.mxu0 %v1380
    %1886 = vmatpush.bf16.msra.mxu0 %v1378
    %1887 = vmatpush.bf16.msra.mxu0 %v1376
    %1888 = vmatpush.bf16.msra.mxu0 %v1374
    %1889 = vmatpush.bf16.msra.mxu0 %v1372
    %1890 = vmatpush.bf16.msra.mxu0 %v1370
    %1891 = vmatpush.bf16.msra.mxu0 %v1368
    %1892 = vmatpush.bf16.msra.mxu0 %v1366
    %1893 = vmatmul.bf16.gmra.mxu0 %v186
    %v1894 = vpop.f32.mrf.mxu0
    %v1895 = vadd.f32 %v1882, %v1894
    %v1896 = vpop.f32.mrf.mxu0
    %1897 = vdwg.mxu0
    %1898 = vmatpush.bf16.msra.mxu0 %v1396
    %1899 = vmatpush.bf16.msra.mxu0 %v1394
    %1900 = vmatpush.bf16.msra.mxu0 %v1392
    %1901 = vmatpush.bf16.msra.mxu0 %v1390
    %1902 = vmatpush.bf16.msra.mxu0 %v1388
    %1903 = vmatpush.bf16.msra.mxu0 %v1386
    %1904 = vmatpush.bf16.msra.mxu0 %v1384
    %1905 = vmatpush.bf16.msra.mxu0 %v1382
    %1906 = vmatmul.bf16.gmra.mxu0 %v187
    %v1907 = vpop.f32.mrf.mxu0
    %v1908 = vadd.f32 %v1895, %v1907
    %v1909 = vpop.f32.mrf.mxu0
    %1910 = vdwg.mxu0
    %1911 = vmatpush.bf16.msra.mxu0 %v1412
    %1912 = vmatpush.bf16.msra.mxu0 %v1410
    %1913 = vmatpush.bf16.msra.mxu0 %v1408
    %1914 = vmatpush.bf16.msra.mxu0 %v1406
    %1915 = vmatpush.bf16.msra.mxu0 %v1404
    %1916 = vmatpush.bf16.msra.mxu0 %v1402
    %1917 = vmatpush.bf16.msra.mxu0 %v1400
    %1918 = vmatpush.bf16.msra.mxu0 %v1398
    %1919 = vmatmul.bf16.gmra.mxu0 %v188
    %v1920 = vpop.f32.mrf.mxu0
    %v1921 = vadd.f32 %v1908, %v1920
    %v1922 = vpop.f32.mrf.mxu0
    %1923 = vdwg.mxu0
    %1924 = vmatpush.bf16.msra.mxu0 %v1428
    %1925 = vmatpush.bf16.msra.mxu0 %v1426
    %1926 = vmatpush.bf16.msra.mxu0 %v1424
    %1927 = vmatpush.bf16.msra.mxu0 %v1422
    %1928 = vmatpush.bf16.msra.mxu0 %v1420
    %1929 = vmatpush.bf16.msra.mxu0 %v1418
    %1930 = vmatpush.bf16.msra.mxu0 %v1416
    %1931 = vmatpush.bf16.msra.mxu0 %v1414
    %1932 = vmatmul.bf16.gmra.mxu0 %v189
    %v1933 = vpop.f32.mrf.mxu0
    %v1934 = vadd.f32 %v1921, %v1933
    %v1935 = vpop.f32.mrf.mxu0
    %1936 = vdwg.mxu0
    %1937 = vmatpush.bf16.msra.mxu0 %v1444
    %1938 = vmatpush.bf16.msra.mxu0 %v1442
    %1939 = vmatpush.bf16.msra.mxu0 %v1440
    %1940 = vmatpush.bf16.msra.mxu0 %v1438
    %1941 = vmatpush.bf16.msra.mxu0 %v1436
    %1942 = vmatpush.bf16.msra.mxu0 %v1434
    %1943 = vmatpush.bf16.msra.mxu0 %v1432
    %1944 = vmatpush.bf16.msra.mxu0 %v1430
    %1945 = vmatmul.bf16.gmra.mxu0 %v190
    %v1946 = vpop.f32.mrf.mxu0
    %v1947 = vadd.f32 %v1934, %v1946
    %v1948 = vpop.f32.mrf.mxu0
    %1949 = vdwg.mxu0
    %1950 = vmatpush.bf16.msra.mxu0 %v1460
    %1951 = vmatpush.bf16.msra.mxu0 %v1458
    %1952 = vmatpush.bf16.msra.mxu0 %v1456
    %1953 = vmatpush.bf16.msra.mxu0 %v1454
    %1954 = vmatpush.bf16.msra.mxu0 %v1452
    %1955 = vmatpush.bf16.msra.mxu0 %v1450
    %1956 = vmatpush.bf16.msra.mxu0 %v1448
    %1957 = vmatpush.bf16.msra.mxu0 %v1446
    %1958 = vmatmul.bf16.gmra.mxu0 %v191
    %v1959 = vpop.f32.mrf.mxu0
    %v1960 = vadd.f32 %v1947, %v1959
    %v1961 = vpop.f32.mrf.mxu0
    %1962 = vdwg.mxu0
    %1963 = vmatpush.bf16.msra.mxu0 %v1476
    %1964 = vmatpush.bf16.msra.mxu0 %v1474
    %1965 = vmatpush.bf16.msra.mxu0 %v1472
    %1966 = vmatpush.bf16.msra.mxu0 %v1470
    %1967 = vmatpush.bf16.msra.mxu0 %v1468
    %1968 = vmatpush.bf16.msra.mxu0 %v1466
    %1969 = vmatpush.bf16.msra.mxu0 %v1464
    %1970 = vmatpush.bf16.msra.mxu0 %v1462
    %1971 = vmatmul.bf16.gmra.mxu0 %v192
    %v1972 = vpop.f32.mrf.mxu0
    %v1973 = vadd.f32 %v1960, %v1972
    %v1974 = vpop.f32.mrf.mxu0
    %1975 = vdwg.mxu0
    %1976 = vmatpush.bf16.msra.mxu0 %v1492
    %1977 = vmatpush.bf16.msra.mxu0 %v1490
    %1978 = vmatpush.bf16.msra.mxu0 %v1488
    %1979 = vmatpush.bf16.msra.mxu0 %v1486
    %1980 = vmatpush.bf16.msra.mxu0 %v1484
    %1981 = vmatpush.bf16.msra.mxu0 %v1482
    %1982 = vmatpush.bf16.msra.mxu0 %v1480
    %1983 = vmatpush.bf16.msra.mxu0 %v1478
    %1984 = vmatmul.bf16.gmra.mxu0 %v193
    %v1985 = vpop.f32.mrf.mxu0
    %v1986 = vadd.f32 %v1973, %v1985
    %v1987 = vpop.f32.mrf.mxu0
    %1988 = vdwg.mxu0
    %1989 = vmatpush.bf16.msra.mxu0 %v1508
    %1990 = vmatpush.bf16.msra.mxu0 %v1506
    %1991 = vmatpush.bf16.msra.mxu0 %v1504
    %1992 = vmatpush.bf16.msra.mxu0 %v1502
    %1993 = vmatpush.bf16.msra.mxu0 %v1500
    %1994 = vmatpush.bf16.msra.mxu0 %v1498
    %1995 = vmatpush.bf16.msra.mxu0 %v1496
    %1996 = vmatpush.bf16.msra.mxu0 %v1494
    %1997 = vmatmul.bf16.gmra.mxu0 %v194
    %v1998 = vpop.f32.mrf.mxu0
    %v1999 = vadd.f32 %v1986, %v1998
    %v2000 = vpop.f32.mrf.mxu0
    %2001 = vdwg.mxu0
    %2002 = vmatpush.bf16.msra.mxu0 0
    %2003 = vmatpush.bf16.msra.mxu0 0
    %2004 = vmatpush.bf16.msra.mxu0 0
    %2005 = vmatpush.bf16.msra.mxu0 0
    %2006 = vmatpush.bf16.msra.mxu0 %v1789
    %2007 = vmatpush.bf16.msra.mxu0 %v1514
    %2008 = vmatpush.bf16.msra.mxu0 %v1512
    %2009 = vmatpush.bf16.msra.mxu0 %v1510
    %2010 = vmatmul.bf16.gmra.mxu0 %v1782
    %v2011 = vpop.f32.mrf.mxu0
    %v2012 = vadd.f32 %v1999, %v2011
    %v2013 = vpop.f32.mrf.mxu0
    %2014 = vdwg.mxu0
    %2015 = vmatpush.bf16.msra.mxu0 %v1269
    %2016 = vmatpush.bf16.msra.mxu0 %v1267
    %2017 = vmatpush.bf16.msra.mxu0 %v1265
    %2018 = vmatpush.bf16.msra.mxu0 %v1263
    %2019 = vmatpush.bf16.msra.mxu0 %v1261
    %2020 = vmatpush.bf16.msra.mxu0 %v1259
    %2021 = vmatpush.bf16.msra.mxu0 %v1257
    %2022 = vmatpush.bf16.msra.mxu0 %v1255
    %2023 = vmatmul.bf16.gmra.mxu0 %v179
    %v2024 = vpop.f32.mrf.mxu0
    %v2025 = vadd.f32 %v462, %v2024
    %v2026 = vpop.f32.mrf.mxu0
    %2027 = vdwg.mxu0
    %2028 = vmatpush.bf16.msra.mxu0 %v1285
    %2029 = vmatpush.bf16.msra.mxu0 %v1283
    %2030 = vmatpush.bf16.msra.mxu0 %v1281
    %2031 = vmatpush.bf16.msra.mxu0 %v1279
    %2032 = vmatpush.bf16.msra.mxu0 %v1277
    %2033 = vmatpush.bf16.msra.mxu0 %v1275
    %2034 = vmatpush.bf16.msra.mxu0 %v1273
    %2035 = vmatpush.bf16.msra.mxu0 %v1271
    %2036 = vmatmul.bf16.gmra.mxu0 %v180
    %v2037 = vpop.f32.mrf.mxu0
    %v2038 = vadd.f32 %v2025, %v2037
    %v2039 = vpop.f32.mrf.mxu0
    %2040 = vdwg.mxu0
    %2041 = vmatpush.bf16.msra.mxu0 %v1301
    %2042 = vmatpush.bf16.msra.mxu0 %v1299
    %2043 = vmatpush.bf16.msra.mxu0 %v1297
    %2044 = vmatpush.bf16.msra.mxu0 %v1295
    %2045 = vmatpush.bf16.msra.mxu0 %v1293
    %2046 = vmatpush.bf16.msra.mxu0 %v1291
    %2047 = vmatpush.bf16.msra.mxu0 %v1289
    %2048 = vmatpush.bf16.msra.mxu0 %v1287
    %2049 = vmatmul.bf16.gmra.mxu0 %v181
    %v2050 = vpop.f32.mrf.mxu0
    %v2051 = vadd.f32 %v2038, %v2050
    %v2052 = vpop.f32.mrf.mxu0
    %2053 = vdwg.mxu0
    %2054 = vmatpush.bf16.msra.mxu0 %v1317
    %2055 = vmatpush.bf16.msra.mxu0 %v1315
    %2056 = vmatpush.bf16.msra.mxu0 %v1313
    %2057 = vmatpush.bf16.msra.mxu0 %v1311
    %2058 = vmatpush.bf16.msra.mxu0 %v1309
    %2059 = vmatpush.bf16.msra.mxu0 %v1307
    %2060 = vmatpush.bf16.msra.mxu0 %v1305
    %2061 = vmatpush.bf16.msra.mxu0 %v1303
    %2062 = vmatmul.bf16.gmra.mxu0 %v182
    %v2063 = vpop.f32.mrf.mxu0
    %v2064 = vadd.f32 %v2051, %v2063
    %v2065 = vpop.f32.mrf.mxu0
    %2066 = vdwg.mxu0
    %2067 = vmatpush.bf16.msra.mxu0 %v1333
    %2068 = vmatpush.bf16.msra.mxu0 %v1331
    %2069 = vmatpush.bf16.msra.mxu0 %v1329
    %2070 = vmatpush.bf16.msra.mxu0 %v1327
    %2071 = vmatpush.bf16.msra.mxu0 %v1325
    %2072 = vmatpush.bf16.msra.mxu0 %v1323
    %2073 = vmatpush.bf16.msra.mxu0 %v1321
    %2074 = vmatpush.bf16.msra.mxu0 %v1319
    %2075 = vmatmul.bf16.gmra.mxu0 %v183
    %v2076 = vpop.f32.mrf.mxu0
    %v2077 = vadd.f32 %v2064, %v2076
    %v2078 = vpop.f32.mrf.mxu0
    %2079 = vdwg.mxu0
    %2080 = vmatpush.bf16.msra.mxu0 %v1349
    %2081 = vmatpush.bf16.msra.mxu0 %v1347
    %2082 = vmatpush.bf16.msra.mxu0 %v1345
    %2083 = vmatpush.bf16.msra.mxu0 %v1343
    %2084 = vmatpush.bf16.msra.mxu0 %v1341
    %2085 = vmatpush.bf16.msra.mxu0 %v1339
    %2086 = vmatpush.bf16.msra.mxu0 %v1337
    %2087 = vmatpush.bf16.msra.mxu0 %v1335
    %2088 = vmatmul.bf16.gmra.mxu0 %v184
    %v2089 = vpop.f32.mrf.mxu0
    %v2090 = vadd.f32 %v2077, %v2089
    %v2091 = vpop.f32.mrf.mxu0
    %2092 = vdwg.mxu0
    %2093 = vmatpush.bf16.msra.mxu0 %v1365
    %2094 = vmatpush.bf16.msra.mxu0 %v1363
    %2095 = vmatpush.bf16.msra.mxu0 %v1361
    %2096 = vmatpush.bf16.msra.mxu0 %v1359
    %2097 = vmatpush.bf16.msra.mxu0 %v1357
    %2098 = vmatpush.bf16.msra.mxu0 %v1355
    %2099 = vmatpush.bf16.msra.mxu0 %v1353
    %2100 = vmatpush.bf16.msra.mxu0 %v1351
    %2101 = vmatmul.bf16.gmra.mxu0 %v185
    %v2102 = vpop.f32.mrf.mxu0
    %v2103 = vadd.f32 %v2090, %v2102
    %v2104 = vpop.f32.mrf.mxu0
    %2105 = vdwg.mxu0
    %2106 = vmatpush.bf16.msra.mxu0 %v1381
    %2107 = vmatpush.bf16.msra.mxu0 %v1379
    %2108 = vmatpush.bf16.msra.mxu0 %v1377
    %2109 = vmatpush.bf16.msra.mxu0 %v1375
    %2110 = vmatpush.bf16.msra.mxu0 %v1373
    %2111 = vmatpush.bf16.msra.mxu0 %v1371
    %2112 = vmatpush.bf16.msra.mxu0 %v1369
    %2113 = vmatpush.bf16.msra.mxu0 %v1367
    %2114 = vmatmul.bf16.gmra.mxu0 %v186
    %v2115 = vpop.f32.mrf.mxu0
    %v2116 = vadd.f32 %v2103, %v2115
    %v2117 = vpop.f32.mrf.mxu0
    %2118 = vdwg.mxu0
    %2119 = vmatpush.bf16.msra.mxu0 %v1397
    %2120 = vmatpush.bf16.msra.mxu0 %v1395
    %2121 = vmatpush.bf16.msra.mxu0 %v1393
    %2122 = vmatpush.bf16.msra.mxu0 %v1391
    %2123 = vmatpush.bf16.msra.mxu0 %v1389
    %2124 = vmatpush.bf16.msra.mxu0 %v1387
    %2125 = vmatpush.bf16.msra.mxu0 %v1385
    %2126 = vmatpush.bf16.msra.mxu0 %v1383
    %2127 = vmatmul.bf16.gmra.mxu0 %v187
    %v2128 = vpop.f32.mrf.mxu0
    %v2129 = vadd.f32 %v2116, %v2128
    %v2130 = vpop.f32.mrf.mxu0
    %2131 = vdwg.mxu0
    %2132 = vmatpush.bf16.msra.mxu0 %v1413
    %2133 = vmatpush.bf16.msra.mxu0 %v1411
    %2134 = vmatpush.bf16.msra.mxu0 %v1409
    %2135 = vmatpush.bf16.msra.mxu0 %v1407
    %2136 = vmatpush.bf16.msra.mxu0 %v1405
    %2137 = vmatpush.bf16.msra.mxu0 %v1403
    %2138 = vmatpush.bf16.msra.mxu0 %v1401
    %2139 = vmatpush.bf16.msra.mxu0 %v1399
    %2140 = vmatmul.bf16.gmra.mxu0 %v188
    %v2141 = vpop.f32.mrf.mxu0
    %v2142 = vadd.f32 %v2129, %v2141
    %v2143 = vpop.f32.mrf.mxu0
    %2144 = vdwg.mxu0
    %2145 = vmatpush.bf16.msra.mxu0 %v1429
    %2146 = vmatpush.bf16.msra.mxu0 %v1427
    %2147 = vmatpush.bf16.msra.mxu0 %v1425
    %2148 = vmatpush.bf16.msra.mxu0 %v1423
    %2149 = vmatpush.bf16.msra.mxu0 %v1421
    %2150 = vmatpush.bf16.msra.mxu0 %v1419
    %2151 = vmatpush.bf16.msra.mxu0 %v1417
    %2152 = vmatpush.bf16.msra.mxu0 %v1415
    %2153 = vmatmul.bf16.gmra.mxu0 %v189
    %v2154 = vpop.f32.mrf.mxu0
    %v2155 = vadd.f32 %v2142, %v2154
    %v2156 = vpop.f32.mrf.mxu0
    %2157 = vdwg.mxu0
    %2158 = vmatpush.bf16.msra.mxu0 %v1445
    %2159 = vmatpush.bf16.msra.mxu0 %v1443
    %2160 = vmatpush.bf16.msra.mxu0 %v1441
    %2161 = vmatpush.bf16.msra.mxu0 %v1439
    %2162 = vmatpush.bf16.msra.mxu0 %v1437
    %2163 = vmatpush.bf16.msra.mxu0 %v1435
    %2164 = vmatpush.bf16.msra.mxu0 %v1433
    %2165 = vmatpush.bf16.msra.mxu0 %v1431
    %2166 = vmatmul.bf16.gmra.mxu0 %v190
    %v2167 = vpop.f32.mrf.mxu0
    %v2168 = vadd.f32 %v2155, %v2167
    %v2169 = vpop.f32.mrf.mxu0
    %2170 = vdwg.mxu0
    %2171 = vmatpush.bf16.msra.mxu0 %v1461
    %2172 = vmatpush.bf16.msra.mxu0 %v1459
    %2173 = vmatpush.bf16.msra.mxu0 %v1457
    %2174 = vmatpush.bf16.msra.mxu0 %v1455
    %2175 = vmatpush.bf16.msra.mxu0 %v1453
    %2176 = vmatpush.bf16.msra.mxu0 %v1451
    %2177 = vmatpush.bf16.msra.mxu0 %v1449
    %2178 = vmatpush.bf16.msra.mxu0 %v1447
    %2179 = vmatmul.bf16.gmra.mxu0 %v191
    %v2180 = vpop.f32.mrf.mxu0
    %v2181 = vadd.f32 %v2168, %v2180
    %v2182 = vpop.f32.mrf.mxu0
    %2183 = vdwg.mxu0
    %2184 = vmatpush.bf16.msra.mxu0 %v1477
    %2185 = vmatpush.bf16.msra.mxu0 %v1475
    %2186 = vmatpush.bf16.msra.mxu0 %v1473
    %2187 = vmatpush.bf16.msra.mxu0 %v1471
    %2188 = vmatpush.bf16.msra.mxu0 %v1469
    %2189 = vmatpush.bf16.msra.mxu0 %v1467
    %2190 = vmatpush.bf16.msra.mxu0 %v1465
    %2191 = vmatpush.bf16.msra.mxu0 %v1463
    %2192 = vmatmul.bf16.gmra.mxu0 %v192
    %v2193 = vpop.f32.mrf.mxu0
    %v2194 = vadd.f32 %v2181, %v2193
    %v2195 = vpop.f32.mrf.mxu0
    %2196 = vdwg.mxu0
    %2197 = vmatpush.bf16.msra.mxu0 %v1493
    %2198 = vmatpush.bf16.msra.mxu0 %v1491
    %2199 = vmatpush.bf16.msra.mxu0 %v1489
    %2200 = vmatpush.bf16.msra.mxu0 %v1487
    %2201 = vmatpush.bf16.msra.mxu0 %v1485
    %2202 = vmatpush.bf16.msra.mxu0 %v1483
    %2203 = vmatpush.bf16.msra.mxu0 %v1481
    %2204 = vmatpush.bf16.msra.mxu0 %v1479
    %2205 = vmatmul.bf16.gmra.mxu0 %v193
    %v2206 = vpop.f32.mrf.mxu0
    %v2207 = vadd.f32 %v2194, %v2206
    %v2208 = vpop.f32.mrf.mxu0
    %2209 = vdwg.mxu0
    %2210 = vmatpush.bf16.msra.mxu0 %v1509
    %2211 = vmatpush.bf16.msra.mxu0 %v1507
    %2212 = vmatpush.bf16.msra.mxu0 %v1505
    %2213 = vmatpush.bf16.msra.mxu0 %v1503
    %2214 = vmatpush.bf16.msra.mxu0 %v1501
    %2215 = vmatpush.bf16.msra.mxu0 %v1499
    %2216 = vmatpush.bf16.msra.mxu0 %v1497
    %2217 = vmatpush.bf16.msra.mxu0 %v1495
    %2218 = vmatmul.bf16.gmra.mxu0 %v194
    %v2219 = vpop.f32.mrf.mxu0
    %v2220 = vadd.f32 %v2207, %v2219
    %v2221 = vpop.f32.mrf.mxu0
    %2222 = vdwg.mxu0
    %2223 = vmatpush.bf16.msra.mxu0 0
    %2224 = vmatpush.bf16.msra.mxu0 0
    %2225 = vmatpush.bf16.msra.mxu0 0
    %2226 = vmatpush.bf16.msra.mxu0 0
    %2227 = vmatpush.bf16.msra.mxu0 %v1792
    %2228 = vmatpush.bf16.msra.mxu0 %v1515
    %2229 = vmatpush.bf16.msra.mxu0 %v1513
    %2230 = vmatpush.bf16.msra.mxu0 %v1511
    %2231 = vmatmul.bf16.gmra.mxu0 %v1782
    %v2232 = vpop.f32.mrf.mxu0
    %v2233 = vadd.f32 %v2220, %v2232
    %v2234 = vpop.f32.mrf.mxu0
    %2235 = vdwg.mxu0
    %v2236 = vmax.f32 %v2012, 0.0
    %v2237 = vmax.f32 %v2233, 0.0
    %v2238 = vpack.c.bf16 %v2236, %v2236
    %v2239 = vpack.c.bf16 %v2237, %v2237
    %v2240 = vld [vmem:[#allocation8] sm:$0xf]
    %v2241 = vld [vmem:[#allocation8 + $0x4] sm:$0xf]
    %v2242 = vld [vmem:[#allocation8 + $0x8] sm:$0xf]
    %v2243 = vld [vmem:[#allocation8 + $0xc] sm:$0xf]
    %v2244 = vld [vmem:[#allocation8 + $0x10] sm:$0xf]
    %v2245 = vld [vmem:[#allocation8 + $0x14] sm:$0xf]
    %v2246 = vld [vmem:[#allocation8 + $0x18] sm:$0xf]
    %v2247 = vld [vmem:[#allocation8 + $0x1c] sm:$0xf]
    %v2248 = vld [vmem:[#allocation8 + $0x20] sm:$0xf]
    %v2249 = vld [vmem:[#allocation8 + $0x24] sm:$0xf]
    %v2250 = vld [vmem:[#allocation8 + $0x28] sm:$0xf]
    %v2251 = vld [vmem:[#allocation8 + $0x2c] sm:$0xf]
    %v2252 = vld [vmem:[#allocation8 + $0x30] sm:$0xf]
    %v2253 = vld [vmem:[#allocation8 + $0x34] sm:$0xf]
    %v2254 = vld [vmem:[#allocation8 + $0x38] sm:$0xf]
    %v2255 = vld [vmem:[#allocation8 + $0x3c] sm:$0xf]
    %v2256 = vld [vmem:[#allocation8 + $0x40] sm:$0xf]
    %v2257 = vld [vmem:[#allocation8 + $0x44] sm:$0xf]
    %v2258 = vld [vmem:[#allocation8 + $0x48] sm:$0xf]
    %v2259 = vld [vmem:[#allocation8 + $0x4c] sm:$0xf]
    %v2260 = vld [vmem:[#allocation8 + $0x50] sm:$0xf]
    %v2261 = vld [vmem:[#allocation8 + $0x54] sm:$0xf]
    %v2262 = vld [vmem:[#allocation8 + $0x58] sm:$0xf]
    %v2263 = vld [vmem:[#allocation8 + $0x5c] sm:$0xf]
    %v2264 = vld [vmem:[#allocation8 + $0x60] sm:$0xf]
    %v2265 = vld [vmem:[#allocation8 + $0x64] sm:$0xf]
    %v2266 = vld [vmem:[#allocation8 + $0x68] sm:$0xf]
    %v2267 = vld [vmem:[#allocation8 + $0x6c] sm:$0xf]
    %v2268 = vld [vmem:[#allocation8 + $0x70] sm:$0xf]
    %v2269 = vld [vmem:[#allocation8 + $0x74] sm:$0xf]
    %v2270 = vld [vmem:[#allocation8 + $0x78] sm:$0xf]
    %v2271 = vld [vmem:[#allocation8 + $0x7c] sm:$0xf]
    %v2272 = vld [vmem:[#allocation10] sm:$0x1]
    %v2274 = vperm.slane %v2272, 0
    %v2308 = vunpack.c.l.b16 %v2240
    %v2309 = vunpack.c.l.b16 %v2241
    %v2310 = vunpack.c.l.b16 %v2242
    %v2311 = vunpack.c.l.b16 %v2243
    %v2312 = vunpack.c.l.b16 %v2244
    %v2313 = vunpack.c.l.b16 %v2245
    %v2314 = vunpack.c.l.b16 %v2246
    %v2315 = vunpack.c.l.b16 %v2247
    %v2316 = vunpack.c.l.b16 %v2248
    %v2317 = vunpack.c.l.b16 %v2249
    %v2318 = vunpack.c.l.b16 %v2250
    %v2319 = vunpack.c.l.b16 %v2251
    %v2320 = vunpack.c.l.b16 %v2252
    %v2321 = vunpack.c.l.b16 %v2253
    %v2322 = vunpack.c.l.b16 %v2254
    %v2323 = vunpack.c.l.b16 %v2255
    %v2324 = vunpack.c.l.b16 %v2256
    %v2325 = vunpack.c.l.b16 %v2257
    %v2326 = vunpack.c.l.b16 %v2258
    %v2327 = vunpack.c.l.b16 %v2259
    %v2328 = vunpack.c.l.b16 %v2260
    %v2329 = vunpack.c.l.b16 %v2261
    %v2330 = vunpack.c.l.b16 %v2262
    %v2331 = vunpack.c.l.b16 %v2263
    %v2332 = vunpack.c.l.b16 %v2264
    %v2333 = vunpack.c.l.b16 %v2265
    %v2334 = vunpack.c.l.b16 %v2266
    %v2335 = vunpack.c.l.b16 %v2267
    %v2336 = vunpack.c.l.b16 %v2268
    %v2337 = vunpack.c.l.b16 %v2269
    %v2338 = vunpack.c.l.b16 %v2270
    %v2339 = vunpack.c.l.b16 %v2271
    %v2340 = vpack.c.b16 %v2309, %v2308
    %v2341 = vpack.c.b16 %v2311, %v2310
    %v2342 = vpack.c.b16 %v2313, %v2312
    %v2343 = vpack.c.b16 %v2315, %v2314
    %v2344 = vpack.c.b16 %v2317, %v2316
    %v2345 = vpack.c.b16 %v2319, %v2318
    %v2346 = vpack.c.b16 %v2321, %v2320
    %v2347 = vpack.c.b16 %v2323, %v2322
    %v2348 = vpack.c.b16 %v2325, %v2324
    %v2349 = vpack.c.b16 %v2327, %v2326
    %v2350 = vpack.c.b16 %v2329, %v2328
    %v2351 = vpack.c.b16 %v2331, %v2330
    %v2352 = vpack.c.b16 %v2333, %v2332
    %v2353 = vpack.c.b16 %v2335, %v2334
    %v2354 = vpack.c.b16 %v2337, %v2336
    %v2355 = vpack.c.b16 %v2339, %v2338
    %2372 = vmatpush.bf16.msra.mxu0 %v2347
    %2373 = vmatpush.bf16.msra.mxu0 %v2346
    %2374 = vmatpush.bf16.msra.mxu0 %v2345
    %2375 = vmatpush.bf16.msra.mxu0 %v2344
    %2376 = vmatpush.bf16.msra.mxu0 %v2343
    %2377 = vmatpush.bf16.msra.mxu0 %v2342
    %2378 = vmatpush.bf16.msra.mxu0 %v2341
    %2379 = vmatpush.bf16.msra.mxu0 %v2340
    %2380 = vmatmul.bf16.gmra.mxu0 %v2238
    %v2381 = vpop.f32.mrf.mxu0
    %v2382 = vadd.f32 %v2274, %v2381
    %v2383 = vpop.f32.mrf.mxu0
    %2384 = vdwg.mxu0
    %2385 = vmatpush.bf16.msra.mxu0 %v2355
    %2386 = vmatpush.bf16.msra.mxu0 %v2354
    %2387 = vmatpush.bf16.msra.mxu0 %v2353
    %2388 = vmatpush.bf16.msra.mxu0 %v2352
    %2389 = vmatpush.bf16.msra.mxu0 %v2351
    %2390 = vmatpush.bf16.msra.mxu0 %v2350
    %2391 = vmatpush.bf16.msra.mxu0 %v2349
    %2392 = vmatpush.bf16.msra.mxu0 %v2348
    %2393 = vmatmul.bf16.gmra.mxu0 %v2239
    %v2394 = vpop.f32.mrf.mxu0
    %v2395 = vadd.f32 %v2382, %v2394
    %v2396 = vpop.f32.mrf.mxu0
    %2397 = vdwg.mxu0
    %v2398 = vmax.f32 %v2395, 0.0
    %v2399 = vpack.c.bf16 %v2398, %v2398
    %v2400 = vld [vmem:[#allocation11] sm:$0xf]
    %v2401 = vld [vmem:[#allocation11 + $0x4] sm:$0xf]
    %v2402 = vld [vmem:[#allocation11 + $0x8] sm:$0xf]
    %v2403 = vld [vmem:[#allocation11 + $0xc] sm:$0xf]
    %v2404 = vld [vmem:[#allocation11 + $0x10] sm:$0xf]
    %v2405 = vld [vmem:[#allocation11 + $0x14] sm:$0xf]
    %v2406 = vld [vmem:[#allocation11 + $0x18] sm:$0xf]
    %v2407 = vld [vmem:[#allocation11 + $0x1c] sm:$0xf]
    %v2408 = vld [vmem:[#allocation11 + $0x20] sm:$0xf]
    %v2409 = vld [vmem:[#allocation11 + $0x24] sm:$0xf]
    %v2410 = vld [vmem:[#allocation11 + $0x28] sm:$0xf]
    %v2411 = vld [vmem:[#allocation11 + $0x2c] sm:$0xf]
    %v2412 = vld [vmem:[#allocation11 + $0x30] sm:$0xf]
    %v2413 = vld [vmem:[#allocation11 + $0x34] sm:$0xf]
    %v2414 = vld [vmem:[#allocation11 + $0x38] sm:$0xf]
    %v2415 = vld [vmem:[#allocation11 + $0x3c] sm:$0xf]
    %v2416 = vld [vmem:[#allocation13] sm:$0x1]
    %v2418 = vperm.slane %v2416, 0
    %v2436 = vunpack.c.l.b16 %v2400
    %v2437 = vunpack.c.l.b16 %v2401
    %v2438 = vunpack.c.l.b16 %v2402
    %v2439 = vunpack.c.l.b16 %v2403
    %v2440 = vunpack.c.l.b16 %v2404
    %v2441 = vunpack.c.l.b16 %v2405
    %v2442 = vunpack.c.l.b16 %v2406
    %v2443 = vunpack.c.l.b16 %v2407
    %v2444 = vunpack.c.l.b16 %v2408
    %v2445 = vunpack.c.l.b16 %v2409
    %v2446 = vunpack.c.l.b16 %v2410
    %v2447 = vunpack.c.l.b16 %v2411
    %v2448 = vunpack.c.l.b16 %v2412
    %v2449 = vunpack.c.l.b16 %v2413
    %v2450 = vunpack.c.l.b16 %v2414
    %v2451 = vunpack.c.l.b16 %v2415
    %v2452 = vpack.c.b16 %v2437, %v2436
    %v2453 = vpack.c.b16 %v2439, %v2438
    %v2454 = vpack.c.b16 %v2441, %v2440
    %v2455 = vpack.c.b16 %v2443, %v2442
    %v2456 = vpack.c.b16 %v2445, %v2444
    %v2457 = vpack.c.b16 %v2447, %v2446
    %v2458 = vpack.c.b16 %v2449, %v2448
    %v2459 = vpack.c.b16 %v2451, %v2450
    %2468 = vmatpush.bf16.msra.mxu0 %v2459
    %2469 = vmatpush.bf16.msra.mxu0 %v2458
    %2470 = vmatpush.bf16.msra.mxu0 %v2457
    %2471 = vmatpush.bf16.msra.mxu0 %v2456
    %2472 = vmatpush.bf16.msra.mxu0 %v2455
    %2473 = vmatpush.bf16.msra.mxu0 %v2454
    %2474 = vmatpush.bf16.msra.mxu0 %v2453
    %2475 = vmatpush.bf16.msra.mxu0 %v2452
    %2476 = vmatmul.bf16.gmra.mxu0 %v2399
    %v2477 = vpop.f32.mrf.mxu0
    %v2478 = vadd.f32 %v2418, %v2477
    %v2479 = vpop.f32.mrf.mxu0
    %2480 = vdwg.mxu0
    %2481 = vst [vmem:[#allocation14] sm:$0x3] %v2478
    // Predicated region
    $region58: #{mlp_forward.1} parent=1 // pred_check
      _
    $region59: #{mlp_forward.1} parent=1 // pred_check_branch
      %2483 = sbr.rel (0) target = $region61
    $region60: #{mlp_forward.1} parent=1 // pred_region
      %2485 = vsyncadd [#allocation4], 0
      %s2487 = sshll.u32 [#allocation14], 4
      %s2488 = int_to_ptr.vmem [resolvable:$true] %s2487
      %s2489 = sshll.u32 %s7, 4
      %s2490 = int_to_ptr.hbm [resolvable:$true] %s2489
      %2492 = dma.vmem_to_hbm [thread:$0]  %s2488, 32, %s2490, [#allocation4]
    $region61: #{mlp_forward.1} parent=1 // pred_fallthru
      _
    // Predicated region
    $region62: #{mlp_forward.1} parent=1 // pred_check
      _
    $region63: #{mlp_forward.1} parent=1 // pred_check_branch
      %2494 = sbr.rel (0) target = $region65
    $region64: #{mlp_forward.1} parent=1 // pred_region
      %2496 = dma.done [#allocation4], 32
    $region65: #{mlp_forward.1} parent=1 // pred_fallthru
      _
    %2497 = vsyncpa [#allocation3], 1
    %2498 = vsyncpa [#allocation6], 1
    %2499 = vsyncpa [#allocation9], 1
    %2500 = vsyncpa [#allocation12], 1
    %2501 = vsyncpa [#allocation4], 1

</llo_original>
